<compile_context>
chip_gen: v6e
topology: v6e:2x2x1
jax: 0.10.0
libtpu: 0.0.40
codegen_flags: <defaults>
</compile_context>

<pallas_src>
import jax
import jax.numpy as jnp
from jax.experimental import pallas as pl
from jax.experimental.pallas import tpu as pltpu


# ---------------------------------------------------------------------------
# Small helpers
# ---------------------------------------------------------------------------
def _round_up(x, m):
    return (x + m - 1) // m * m


def _blk_bytes(rows, cols, itemsize):
    """VMEM footprint of a (rows, cols) block including (8,128) tile padding."""
    return _round_up(max(int(rows), 1), 8) * _round_up(max(int(cols), 1), 128) * itemsize


def _vmem_budget():
    """Generation-aware working-set budget (bytes): ~40MiB v7x, ~83MiB v5e/v6e."""
    cap = 64 << 20                       # conservative default (v7x per-TC VMEM)
    try:
        cap = int(pltpu.get_tpu_info().vmem_capacity_bytes)
    except Exception:
        pass
    return max(16 << 20, min(int(cap * 0.65), 96 << 20))


def _vmem_limit(need, budget):
    return int(min(max(need + (8 << 20), 32 << 20), max(budget, 32 << 20)))


def _pick_tile_m(M, K, Cout, budget):
    """VMEM-budget-driven M tile for the im2col matmul (multiple of 128)."""
    tile = 128
    for cand in (256, 512, 1024, 2048):
        need = (2 * _blk_bytes(cand, K, 2) + 2 * _blk_bytes(cand, Cout, 2)
                + 2 * _blk_bytes(K, Cout, 2) + 2 * _blk_bytes(8, Cout, 4)
                + _blk_bytes(cand, Cout, 4) + (4 << 20))
        if need <= budget:
            tile = cand
    while tile > 128 and tile >= M:      # keep >= 2 grid tiles when M allows
        tile //= 2
    return tile


def _pick_tr(Ho, Wo, N, C2, Cout, budget, target_mt=2048):
    """Rows-per-tile for conv2 (divides Ho, fits budget, >= 2 tiles if N == 1)."""
    max_tr = Ho if N >= 2 else max(1, Ho // 2)
    best = 1
    for tr in range(1, Ho + 1):
        if Ho % tr != 0 or tr > max_tr:
            continue
        mt = tr * (Wo + 2)
        slab = (tr + 2) * (Wo + 2) + 8
        need = (2 * _blk_bytes(slab, C2, 2) + 2 * _blk_bytes(mt, Cout, 2)
                + 2 * _blk_bytes(mt, Cout, 4) + 2 * _blk_bytes(9 * C2, Cout, 2)
                + 2 * _blk_bytes(8, Cout, 4) + 2 * _blk_bytes(mt, Cout, 4)
                + (4 << 20))
        if mt <= target_mt and need <= budget:
            best = tr
    return best


# ---------------------------------------------------------------------------
# Pallas kernels
# ---------------------------------------------------------------------------
def _conv_bn_kernel(p_ref, w_ref, bst_ref, o_ref):
    """out = bn1(relu(conv1(x))) for one M tile of im2col patches.

    p_ref   : (TM, K)    bf16 im2col patches
    w_ref   : (K, Cout)  bf16 conv weight (im2col layout), VMEM-resident
    bst_ref : (8, Cout)  f32 row0=conv bias, row1=bn scale, row2=bn shift
    o_ref   : (TM, Cout) bf16 output tile
    """
    acc = jnp.dot(p_ref[...], w_ref[...], preferred_element_type=jnp.float32)
    h = jnp.maximum(acc + bst_ref[0:1, :], 0.0)            # conv bias + ReLU
    o_ref[...] = (h * bst_ref[1:2, :] + bst_ref[2:3, :]).astype(o_ref.dtype)


def _make_conv2_kernel(mt, w2p, c_in):
    """out = bn2(relu(conv2(h) + shortcut)); 3x3 taps accumulated in-kernel.

    xs_ref  : (1, SLAB, c_in)  bf16 halo-inclusive pixel-row slab of padded h
    w_ref   : (9*c_in, Cout)   bf16 per-tap weights, VMEM-resident
    bst_ref : (8, Cout)        f32 bias / bn-scale / bn-shift, VMEM-resident
    sc_ref  : (1, mt, Cout)    bf16 shortcut laid out like the output tile
    o_ref   : (1, mt, Cout)    output tile ((q, w') rows; w'>=Wo is garbage,
                               discarded by the wrapper)
    """
    def kernel(xs_ref, w_ref, bst_ref, sc_ref, o_ref):
        acc = None
        for t in range(9):                                  # statically unrolled
            dh, dw = divmod(t, 3)
            start = dh * w2p + dw
            a = xs_ref[0, start:start + mt, :]              # (mt, c_in) bf16
            wt = w_ref[t * c_in:(t + 1) * c_in, :]          # (c_in, Cout) bf16
            d = jnp.dot(a, wt, preferred_element_type=jnp.float32)
            acc = d if acc is None else acc + d
        z = acc + bst_ref[0:1, :] + sc_ref[0].astype(jnp.float32)
        h = jnp.maximum(z, 0.0)
        o_ref[0] = (h * bst_ref[1:2, :] + bst_ref[2:3, :]).astype(o_ref.dtype)
    return kernel


# ---------------------------------------------------------------------------
# pallas_call wrappers
# ---------------------------------------------------------------------------
def _run_conv_bn(patches, w, bst, *, tile_m, budget, out_dtype):
    MP, K = patches.shape
    Cout = w.shape[1]
    osz = jnp.dtype(out_dtype).itemsize
    need = (2 * _blk_bytes(tile_m, K, 2) + 2 * _blk_bytes(tile_m, Cout, osz)
            + 2 * _blk_bytes(K, Cout, 2) + 2 * _blk_bytes(8, Cout, 4)
            + _blk_bytes(tile_m, Cout, 4))
    return pl.pallas_call(
        _conv_bn_kernel,
        out_shape=jax.ShapeDtypeStruct((MP, Cout), out_dtype),
        grid=(MP // tile_m,),
        in_specs=[
            pl.BlockSpec((tile_m, K), lambda m: (m, 0)),
            pl.BlockSpec((K, Cout), lambda m: (0, 0)),      # VMEM-resident
            pl.BlockSpec((8, Cout), lambda m: (0, 0)),      # VMEM-resident
        ],
        out_specs=pl.BlockSpec((tile_m, Cout), lambda m: (m, 0)),
        compiler_params=pltpu.CompilerParams(
            dimension_semantics=("parallel",),
            vmem_limit_bytes=_vmem_limit(need, budget)),
        cost_estimate=pl.CostEstimate(
            flops=2 * MP * K * Cout, transcendentals=0,
            bytes_accessed=MP * K * 2 + K * Cout * 2 + 8 * Cout * 4
                           + MP * Cout * osz),
    )(patches, w, bst)


def _run_conv2(slabs, w, bst, scw, *, mt, w2p, budget, out_dtype):
    NT, SLAB, C2 = slabs.shape
    Cout = w.shape[1]
    osz = jnp.dtype(out_dtype).itemsize
    need = (2 * _blk_bytes(SLAB, C2, 2) + 2 * _blk_bytes(mt, Cout, 2)
            + 2 * _blk_bytes(mt, Cout, osz) + 2 * _blk_bytes(9 * C2, Cout, 2)
            + 2 * _blk_bytes(8, Cout, 4) + 2 * _blk_bytes(mt, Cout, 4))
    kernel = _make_conv2_kernel(mt, w2p, C2)
    return pl.pallas_call(
        kernel,
        out_shape=jax.ShapeDtypeStruct((NT, mt, Cout), out_dtype),
        grid=(NT,),
        in_specs=[
            pl.BlockSpec((1, SLAB, C2), lambda i: (i, 0, 0)),
            pl.BlockSpec((9 * C2, Cout), lambda i: (0, 0)),   # VMEM-resident
            pl.BlockSpec((8, Cout), lambda i: (0, 0)),        # VMEM-resident
            pl.BlockSpec((1, mt, Cout), lambda i: (i, 0, 0)),
        ],
        out_specs=pl.BlockSpec((1, mt, Cout), lambda i: (i, 0, 0)),
        compiler_params=pltpu.CompilerParams(
            dimension_semantics=("parallel",),
            vmem_limit_bytes=_vmem_limit(need, budget)),
        cost_estimate=pl.CostEstimate(
            flops=2 * NT * mt * 9 * C2 * Cout, transcendentals=0,
            bytes_accessed=NT * (SLAB * C2 * 2 + mt * Cout * 2 + mt * Cout * osz)
                           + 9 * C2 * Cout * 2 + 8 * Cout * 4),
    )(slabs, w, bst, scw)


# ---------------------------------------------------------------------------
# Layout glue (XLA side)
# ---------------------------------------------------------------------------
def _im2col_flat(x_nhwc, stride):
    """3x3 / pad-1 im2col for conv1 (kept in XLA; Cin is small)."""
    N, H, W, C = x_nhwc.shape
    xp = jnp.pad(x_nhwc, ((0, 0), (1, 1), (1, 1), (0, 0)))
    Ho = (H + 2 - 3) // stride + 1
    Wo = (W + 2 - 3) // stride + 1
    taps = []
    for dh in range(3):
        for dw in range(3):
            taps.append(xp[:, dh:dh + stride * (Ho - 1) + 1:stride,
                            dw:dw + stride * (Wo - 1) + 1:stride, :])
    p = jnp.stack(taps, axis=3)                      # (N, Ho, Wo, 9, C)
    return p.reshape(N * Ho * Wo, 9 * C), Ho, Wo


def _to_im2col_weight(w_oihw):
    # (Cout, Cin, 3, 3) -> (3, 3, Cin, Cout) -> (9*Cin, Cout), tap order matched.
    Cout, Cin, _, _ = w_oihw.shape
    return jnp.transpose(w_oihw, (2, 3, 1, 0)).reshape(9 * Cin, Cout).astype(jnp.bfloat16)


def _pack_bst(bias, scale, shift):
    c = bias.shape[0]
    m = jnp.zeros((8, c), jnp.float32)
    m = m.at[0].set(bias.astype(jnp.float32))
    m = m.at[1].set(scale.astype(jnp.float32))
    m = m.at[2].set(shift.astype(jnp.float32))
    return m


def _conv2_fused(h_nhwc, w_oihw, bst, sc_nhwc, *, budget, out_dtype):
    """conv2 + residual + ReLU + bn2 with in-kernel 3x3 tap accumulation."""
    N, Ho, Wo, C2 = h_nhwc.shape
    Cout = w_oihw.shape[0]
    w2p = Wo + 2
    tr = _pick_tr(Ho, Wo, N, C2, Cout, budget)
    rt = Ho // tr
    nt = N * rt
    mt = tr * w2p
    slab = (tr + 2) * w2p + 8

    # Padded activation, flattened to per-image pixel rows (+8 overrun guard).
    hp = jnp.pad(h_nhwc, ((0, 0), (1, 1), (1, 1), (0, 0)))
    hp = hp.reshape(N, (Ho + 2) * w2p, C2)
    hp = jnp.pad(hp, ((0, 0), (0, 8), (0, 0)))
    if rt == 1:
        slabs = hp[:, :slab, :]
    else:
        # Halo-inclusive row slabs (~(tr+2)/tr duplication, not 9x im2col).
        slabs = jnp.stack(
            [hp[:, t * tr * w2p:t * tr * w2p + slab, :] for t in range(rt)], axis=1)
    slabs = slabs.reshape(nt, slab, C2).astype(jnp.bfloat16)

    w = jnp.transpose(w_oihw, (2, 3, 1, 0)).reshape(9 * C2, Cout).astype(jnp.bfloat16)

    # Shortcut in the same (q, w') layout; 2 zero columns per row at w'>=Wo.
    scw = jnp.pad(sc_nhwc, ((0, 0), (0, 0), (0, 2), (0, 0)))
    scw = scw.reshape(nt, mt, Cout).astype(jnp.bfloat16)

    out = _run_conv2(slabs, w, bst, scw, mt=mt, w2p=w2p, budget=budget,
                     out_dtype=out_dtype)                     # (nt, mt, Cout)
    return out.reshape(N, Ho, w2p, Cout)[:, :, :Wo, :]        # drop garbage cols


# ---------------------------------------------------------------------------
# BasicBlock module
# ---------------------------------------------------------------------------
class BasicBlockPallas:
    expansion = 1

    def __init__(self, in_dims, out_dims, stride=1, option="A", *, key,
                 out_dtype=jnp.float32):
        self.in_dims, self.out_dims = in_dims, out_dims
        self.stride, self.option = stride, option
        self.out_dtype = out_dtype
        ks = jax.random.split(key, 12)
        self.w1 = 0.1 * jax.random.normal(ks[0], (out_dims, in_dims, 3, 3), jnp.float32)
        self.b1 = 0.05 * jax.random.normal(ks[1], (out_dims,), jnp.float32)
        self.w2 = 0.1 * jax.random.normal(ks[2], (out_dims, out_dims, 3, 3), jnp.float32)
        self.b2 = 0.05 * jax.random.normal(ks[3], (out_dims,), jnp.float32)
        self.g1 = 1.0 + 0.1 * jax.random.normal(ks[4], (out_dims,), jnp.float32)
        self.be1 = 0.1 * jax.random.normal(ks[5], (out_dims,), jnp.float32)
        self.m1 = 0.1 * jax.random.normal(ks[6], (out_dims,), jnp.float32)
        self.v1 = 1.0 + 0.1 * jnp.abs(jax.random.normal(ks[7], (out_dims,), jnp.float32))
        self.g2 = 1.0 + 0.1 * jax.random.normal(ks[8], (out_dims,), jnp.float32)
        self.be2 = 0.1 * jax.random.normal(ks[9], (out_dims,), jnp.float32)
        self.m2 = 0.1 * jax.random.normal(ks[10], (out_dims,), jnp.float32)
        self.v2 = 1.0 + 0.1 * jnp.abs(jax.random.normal(ks[11], (out_dims,), jnp.float32))
        self.eps = 1e-5

    def _shortcut(self, x_nhwc):
        if self.stride == 1 and self.in_dims == self.out_dims:
            return x_nhwc
        if self.option == "A":
            # Matches the PyTorch lambda: spatial /2 subsample + channel pad.
            s = x_nhwc[:, ::2, ::2, :]
            p = self.out_dims // 4
            return jnp.pad(s, ((0, 0), (0, 0), (0, 0), (p, p)))
        # TODO(synk): option 'B' (1x1 conv + BN shortcut) not implemented.
        raise NotImplementedError("option 'B' shortcut not implemented")

    def __call__(self, x_nchw):
        N = x_nchw.shape[0]
        Cin, Cout = self.in_dims, self.out_dims
        budget = _vmem_budget()
        # TODO(synk): NCHW<->NHWC transposes should be hoisted to network
        # boundaries when chaining blocks; kept per-block to match the API.
        x_nhwc = jnp.transpose(x_nchw, (0, 2, 3, 1))

        # Fold BN running stats into per-channel scale/shift (inference mode).
        s1 = self.g1 / jnp.sqrt(self.v1 + self.eps)
        t1 = self.be1 - self.m1 * s1
        s2 = self.g2 / jnp.sqrt(self.v2 + self.eps)
        t2 = self.be2 - self.m2 * s2
        bst1 = _pack_bst(self.b1, s1, t1)
        bst2 = _pack_bst(self.b2, s2, t2)

        # ---- h = bn1(relu(conv1(x))) : XLA im2col + fused matmul kernel ----
        p1, Ho, Wo = _im2col_flat(x_nhwc, self.stride)
        M = N * Ho * Wo
        K1 = 9 * Cin
        tile_m = _pick_tile_m(M, K1, Cout, budget)
        MP = _round_up(M, tile_m)
        p1 = jnp.pad(p1, ((0, MP - M), (0, 0))).astype(jnp.bfloat16)
        w1 = _to_im2col_weight(self.w1)
        h = _run_conv_bn(p1, w1, bst1, tile_m=tile_m, budget=budget,
                         out_dtype=jnp.bfloat16)              # (MP, Cout) bf16
        # NOTE: rows M..MP-1 hold `shift` (not zero) -> must be sliced off.
        h_nhwc = h[:M, :].reshape(N, Ho, Wo, Cout)

        # ---- y = bn2(relu(conv2(h) + shortcut(x))) : in-kernel 3x3 taps ----
        sc = self._shortcut(x_nhwc)
        y = _conv2_fused(h_nhwc, self.w2, bst2, sc, budget=budget,
                         out_dtype=self.out_dtype)            # (N, Ho, Wo, Cout)
        return jnp.transpose(y, (0, 3, 1, 2))                 # back to NCHW


# ---------------------------------------------------------------------------
# Pure-JAX reference (for correctness check)
# ---------------------------------------------------------------------------
def _reference(block, x):
    def conv(x, w, b, stride):
        y = jax.lax.conv_general_dilated(
            x, w, window_strides=(stride, stride), padding=((1, 1), (1, 1)),
            dimension_numbers=("NCHW", "OIHW", "NCHW"))
        return y + b[None, :, None, None]

    def bn(x, g, b, m, v):
        sc = (g / jnp.sqrt(v + block.eps))[None, :, None, None]
        return (x - m[None, :, None, None]) * sc + b[None, :, None, None]

    out = bn(jnp.maximum(conv(x, block.w1, block.b1, block.stride), 0.0),
             block.g1, block.be1, block.m1, block.v1)
    out = conv(out, block.w2, block.b2, 1)
    sc = x
    if block.stride != 1 or block.in_dims != block.out_dims:
        sc = x[:, :, ::2, ::2]
        p = block.out_dims // 4
        sc = jnp.pad(sc, ((0, 0), (p, p), (0, 0), (0, 0)))
    out = out + sc
    return bn(jnp.maximum(out, 0.0), block.g2, block.be2, block.m2, block.v2)


if __name__ == "__main__":
    key = jax.random.PRNGKey(0)
    k_x, k_p = jax.random.split(key)

    x = jax.random.normal(k_x, (2, 4, 16, 16), jnp.float32)        # NCHW
    block = BasicBlockPallas(in_dims=4, out_dims=8, stride=2, option="A", key=k_p)

    y = jax.jit(block.__call__)(x)
    y = jax.block_until_ready(y)

    y_ref = _reference(block, x)
    assert y.shape == (2, 8, 8, 8), y.shape
    # bf16 matmul operands / bf16 intermediate vs f32 reference => loose tol.
    if not jnp.allclose(y, y_ref, atol=3e-2, rtol=3e-2):
        err = float(jnp.max(jnp.abs(y - y_ref)))
        raise AssertionError(f"Pallas output does not match reference (max err {err})")
    print("KERNEL_OK")
</pallas_src>

<mosaic_0001>
module attributes {stable_mosaic.version = 11 : i64} {
  func.func @_conv_bn_kernel(%arg0: i32, %arg1: memref<128x36xbf16, #tpu.memory_space<vmem>>, %arg2: memref<36x8xbf16, #tpu.memory_space<vmem>>, %arg3: memref<8x8xf32, #tpu.memory_space<vmem>>, %arg4: memref<128x8xbf16, #tpu.memory_space<vmem>>) attributes {dimension_semantics = [#tpu.dimension_semantics<parallel>], iteration_bounds = array<i64: 1>, scalar_prefetch = 0 : i64, scratch_operands = 0 : i64, tpu.core_type = #tpu.core_type<tc>, window_params = [{transform_indices = @transform_0, window_bounds = array<i64: 128, 36>}, {pipeline_mode = #tpu.pipeline_mode<synchronous>, transform_indices = @transform_1, window_bounds = array<i64: 36, 8>}, {pipeline_mode = #tpu.pipeline_mode<synchronous>, transform_indices = @transform_2, window_bounds = array<i64: 8, 8>}, {transform_indices = @transform_3, window_bounds = array<i64: 128, 8>}]} {
    %c0 = arith.constant 0 : index
    %c0_0 = arith.constant 0 : index
    %0 = vector.load %arg1[%c0, %c0_0] : memref<128x36xbf16, #tpu.memory_space<vmem>>, vector<128x36xbf16>
    %c0_1 = arith.constant 0 : index
    %c0_2 = arith.constant 0 : index
    %1 = vector.load %arg2[%c0_1, %c0_2] : memref<36x8xbf16, #tpu.memory_space<vmem>>, vector<36x8xbf16>
    %cst = arith.constant dense<0.000000e+00> : vector<128x8xf32>
    %2 = tpu.matmul %0, %1, %cst {dimension_numbers = #tpu.dot_dimension_numbers<[1], [0], [0], [1], [0, 0, 1, 1], [], []>} : vector<128x36xbf16>, vector<36x8xbf16>, vector<128x8xf32> -> vector<128x8xf32>
    %c0_3 = arith.constant 0 : index
    %c0_4 = arith.constant 0 : index
    %3 = vector.load %arg3[%c0_3, %c0_4] : memref<8x8xf32, #tpu.memory_space<vmem>>, vector<1x8xf32>
    %4 = vector.broadcast %3 : vector<1x8xf32> to vector<128x8xf32>
    %5 = arith.addf %2, %4 : vector<128x8xf32>
    %cst_5 = arith.constant 0.000000e+00 : f32
    %6 = vector.broadcast %cst_5 : f32 to vector<128x8xf32>
    %7 = arith.maximumf %5, %6 : vector<128x8xf32>
    %c1 = arith.constant 1 : index
    %c0_6 = arith.constant 0 : index
    %8 = vector.load %arg3[%c1, %c0_6] : memref<8x8xf32, #tpu.memory_space<vmem>>, vector<1x8xf32>
    %9 = vector.broadcast %8 : vector<1x8xf32> to vector<128x8xf32>
    %10 = arith.mulf %7, %9 : vector<128x8xf32>
    %c2 = arith.constant 2 : index
    %c0_7 = arith.constant 0 : index
    %11 = vector.load %arg3[%c2, %c0_7] : memref<8x8xf32, #tpu.memory_space<vmem>>, vector<1x8xf32>
    %12 = vector.broadcast %11 : vector<1x8xf32> to vector<128x8xf32>
    %13 = arith.addf %10, %12 : vector<128x8xf32>
    %14 = arith.truncf %13 : vector<128x8xf32> to vector<128x8xbf16>
    %c0_8 = arith.constant 0 : index
    %c0_9 = arith.constant 0 : index
    %15 = vector.load %arg4[%c0_8, %c0_9] : memref<128x8xbf16, #tpu.memory_space<vmem>>, vector<128x8xbf16>
    tpu.vector_store %arg4[%c0_8, %c0_9], %14 {strides = array<i32>} : memref<128x8xbf16, #tpu.memory_space<vmem>>, vector<128x8xbf16>,
    return
  }
  func.func @transform_0(%arg0: i32) -> (i32, i32) {
    %c0_i32 = arith.constant 0 : i32
    %c0_i32_0 = arith.constant 0 : i32
    return %arg0, %c0_i32 : i32, i32
  }
  func.func @transform_1(%arg0: i32) -> (i32, i32) {
    %c0_i32 = arith.constant 0 : i32
    %c0_i32_0 = arith.constant 0 : i32
    %c0_i32_1 = arith.constant 0 : i32
    return %c0_i32, %c0_i32_0 : i32, i32
  }
  func.func @transform_2(%arg0: i32) -> (i32, i32) {
    %c0_i32 = arith.constant 0 : i32
    %c0_i32_0 = arith.constant 0 : i32
    %c0_i32_1 = arith.constant 0 : i32
    return %c0_i32, %c0_i32_0 : i32, i32
  }
  func.func @transform_3(%arg0: i32) -> (i32, i32) {
    %c0_i32 = arith.constant 0 : i32
    %c0_i32_0 = arith.constant 0 : i32
    return %arg0, %c0_i32 : i32, i32
  }
}

module attributes {stable_mosaic.version = 11 : i64} {
  func.func @kernel(%arg0: i32, %arg1: memref<1x108x8xbf16, #tpu.memory_space<vmem>>, %arg2: memref<72x8xbf16, #tpu.memory_space<vmem>>, %arg3: memref<8x8xf32, #tpu.memory_space<vmem>>, %arg4: memref<1x80x8xbf16, #tpu.memory_space<vmem>>, %arg5: memref<1x80x8xf32, #tpu.memory_space<vmem>>) attributes {dimension_semantics = [#tpu.dimension_semantics<parallel>], iteration_bounds = array<i64: 2>, scalar_prefetch = 0 : i64, scratch_operands = 0 : i64, tpu.core_type = #tpu.core_type<tc>, window_params = [{transform_indices = @transform_0, window_bounds = array<i64: 1, 108, 8>}, {pipeline_mode = #tpu.pipeline_mode<synchronous>, transform_indices = @transform_1, window_bounds = array<i64: 72, 8>}, {pipeline_mode = #tpu.pipeline_mode<synchronous>, transform_indices = @transform_2, window_bounds = array<i64: 8, 8>}, {transform_indices = @transform_3, window_bounds = array<i64: 1, 80, 8>}, {transform_indices = @transform_4, window_bounds = array<i64: 1, 80, 8>}]} {
    %c0 = arith.constant 0 : index
    %c0_0 = arith.constant 0 : index
    %c0_1 = arith.constant 0 : index
    %0 = vector.load %arg1[%c0, %c0_0, %c0_1] : memref<1x108x8xbf16, #tpu.memory_space<vmem>>, vector<1x80x8xbf16>
    %1 = vector.shape_cast %0 : vector<1x80x8xbf16> to vector<80x8xbf16>
    %c0_2 = arith.constant 0 : index
    %c0_3 = arith.constant 0 : index
    %2 = vector.load %arg2[%c0_2, %c0_3] : memref<72x8xbf16, #tpu.memory_space<vmem>>, vector<8x8xbf16>
    %cst = arith.constant dense<0.000000e+00> : vector<80x8xf32>
    %3 = tpu.matmul %1, %2, %cst {dimension_numbers = #tpu.dot_dimension_numbers<[1], [0], [0], [1], [0, 0, 1, 1], [], []>} : vector<80x8xbf16>, vector<8x8xbf16>, vector<80x8xf32> -> vector<80x8xf32>
    %c0_4 = arith.constant 0 : index
    %c1 = arith.constant 1 : index
    %c0_5 = arith.constant 0 : index
    %4 = vector.load %arg1[%c0_4, %c1, %c0_5] : memref<1x108x8xbf16, #tpu.memory_space<vmem>>, vector<1x80x8xbf16>
    %5 = vector.shape_cast %4 : vector<1x80x8xbf16> to vector<80x8xbf16>
    %c8 = arith.constant 8 : index
    %c0_6 = arith.constant 0 : index
    %6 = vector.load %arg2[%c8, %c0_6] : memref<72x8xbf16, #tpu.memory_space<vmem>>, vector<8x8xbf16>
    %cst_7 = arith.constant dense<0.000000e+00> : vector<80x8xf32>
    %7 = tpu.matmul %5, %6, %cst_7 {dimension_numbers = #tpu.dot_dimension_numbers<[1], [0], [0], [1], [0, 0, 1, 1], [], []>} : vector<80x8xbf16>, vector<8x8xbf16>, vector<80x8xf32> -> vector<80x8xf32>
    %8 = arith.addf %3, %7 : vector<80x8xf32>
    %c0_8 = arith.constant 0 : index
    %c2 = arith.constant 2 : index
    %c0_9 = arith.constant 0 : index
    %9 = vector.load %arg1[%c0_8, %c2, %c0_9] : memref<1x108x8xbf16, #tpu.memory_space<vmem>>, vector<1x80x8xbf16>
    %10 = vector.shape_cast %9 : vector<1x80x8xbf16> to vector<80x8xbf16>
    %c16 = arith.constant 16 : index
    %c0_10 = arith.constant 0 : index
    %11 = vector.load %arg2[%c16, %c0_10] : memref<72x8xbf16, #tpu.memory_space<vmem>>, vector<8x8xbf16>
    %cst_11 = arith.constant dense<0.000000e+00> : vector<80x8xf32>
    %12 = tpu.matmul %10, %11, %cst_11 {dimension_numbers = #tpu.dot_dimension_numbers<[1], [0], [0], [1], [0, 0, 1, 1], [], []>} : vector<80x8xbf16>, vector<8x8xbf16>, vector<80x8xf32> -> vector<80x8xf32>
    %13 = arith.addf %8, %12 : vector<80x8xf32>
    %c0_12 = arith.constant 0 : index
    %c10 = arith.constant 10 : index
    %c0_13 = arith.constant 0 : index
    %14 = vector.load %arg1[%c0_12, %c10, %c0_13] : memref<1x108x8xbf16, #tpu.memory_space<vmem>>, vector<1x80x8xbf16>
    %15 = vector.shape_cast %14 : vector<1x80x8xbf16> to vector<80x8xbf16>
    %c24 = arith.constant 24 : index
    %c0_14 = arith.constant 0 : index
    %16 = vector.load %arg2[%c24, %c0_14] : memref<72x8xbf16, #tpu.memory_space<vmem>>, vector<8x8xbf16>
    %cst_15 = arith.constant dense<0.000000e+00> : vector<80x8xf32>
    %17 = tpu.matmul %15, %16, %cst_15 {dimension_numbers = #tpu.dot_dimension_numbers<[1], [0], [0], [1], [0, 0, 1, 1], [], []>} : vector<80x8xbf16>, vector<8x8xbf16>, vector<80x8xf32> -> vector<80x8xf32>
    %18 = arith.addf %13, %17 : vector<80x8xf32>
    %c0_16 = arith.constant 0 : index
    %c11 = arith.constant 11 : index
    %c0_17 = arith.constant 0 : index
    %19 = vector.load %arg1[%c0_16, %c11, %c0_17] : memref<1x108x8xbf16, #tpu.memory_space<vmem>>, vector<1x80x8xbf16>
    %20 = vector.shape_cast %19 : vector<1x80x8xbf16> to vector<80x8xbf16>
    %c32 = arith.constant 32 : index
    %c0_18 = arith.constant 0 : index
    %21 = vector.load %arg2[%c32, %c0_18] : memref<72x8xbf16, #tpu.memory_space<vmem>>, vector<8x8xbf16>
    %cst_19 = arith.constant dense<0.000000e+00> : vector<80x8xf32>
    %22 = tpu.matmul %20, %21, %cst_19 {dimension_numbers = #tpu.dot_dimension_numbers<[1], [0], [0], [1], [0, 0, 1, 1], [], []>} : vector<80x8xbf16>, vector<8x8xbf16>, vector<80x8xf32> -> vector<80x8xf32>
    %23 = arith.addf %18, %22 : vector<80x8xf32>
    %c0_20 = arith.constant 0 : index
    %c12 = arith.constant 12 : index
    %c0_21 = arith.constant 0 : index
    %24 = vector.load %arg1[%c0_20, %c12, %c0_21] : memref<1x108x8xbf16, #tpu.memory_space<vmem>>, vector<1x80x8xbf16>
    %25 = vector.shape_cast %24 : vector<1x80x8xbf16> to vector<80x8xbf16>
    %c40 = arith.constant 40 : index
    %c0_22 = arith.constant 0 : index
    %26 = vector.load %arg2[%c40, %c0_22] : memref<72x8xbf16, #tpu.memory_space<vmem>>, vector<8x8xbf16>
    %cst_23 = arith.constant dense<0.000000e+00> : vector<80x8xf32>
    %27 = tpu.matmul %25, %26, %cst_23 {dimension_numbers = #tpu.dot_dimension_numbers<[1], [0], [0], [1], [0, 0, 1, 1], [], []>} : vector<80x8xbf16>, vector<8x8xbf16>, vector<80x8xf32> -> vector<80x8xf32>
    %28 = arith.addf %23, %27 : vector<80x8xf32>
    %c0_24 = arith.constant 0 : index
    %c20 = arith.constant 20 : index
    %c0_25 = arith.constant 0 : index
    %29 = vector.load %arg1[%c0_24, %c20, %c0_25] : memref<1x108x8xbf16, #tpu.memory_space<vmem>>, vector<1x80x8xbf16>
    %30 = vector.shape_cast %29 : vector<1x80x8xbf16> to vector<80x8xbf16>
    %c48 = arith.constant 48 : index
    %c0_26 = arith.constant 0 : index
    %31 = vector.load %arg2[%c48, %c0_26] : memref<72x8xbf16, #tpu.memory_space<vmem>>, vector<8x8xbf16>
    %cst_27 = arith.constant dense<0.000000e+00> : vector<80x8xf32>
    %32 = tpu.matmul %30, %31, %cst_27 {dimension_numbers = #tpu.dot_dimension_numbers<[1], [0], [0], [1], [0, 0, 1, 1], [], []>} : vector<80x8xbf16>, vector<8x8xbf16>, vector<80x8xf32> -> vector<80x8xf32>
    %33 = arith.addf %28, %32 : vector<80x8xf32>
    %c0_28 = arith.constant 0 : index
    %c21 = arith.constant 21 : index
    %c0_29 = arith.constant 0 : index
    %34 = vector.load %arg1[%c0_28, %c21, %c0_29] : memref<1x108x8xbf16, #tpu.memory_space<vmem>>, vector<1x80x8xbf16>
    %35 = vector.shape_cast %34 : vector<1x80x8xbf16> to vector<80x8xbf16>
    %c56 = arith.constant 56 : index
    %c0_30 = arith.constant 0 : index
    %36 = vector.load %arg2[%c56, %c0_30] : memref<72x8xbf16, #tpu.memory_space<vmem>>, vector<8x8xbf16>
    %cst_31 = arith.constant dense<0.000000e+00> : vector<80x8xf32>
    %37 = tpu.matmul %35, %36, %cst_31 {dimension_numbers = #tpu.dot_dimension_numbers<[1], [0], [0], [1], [0, 0, 1, 1], [], []>} : vector<80x8xbf16>, vector<8x8xbf16>, vector<80x8xf32> -> vector<80x8xf32>
    %38 = arith.addf %33, %37 : vector<80x8xf32>
    %c0_32 = arith.constant 0 : index
    %c22 = arith.constant 22 : index
    %c0_33 = arith.constant 0 : index
    %39 = vector.load %arg1[%c0_32, %c22, %c0_33] : memref<1x108x8xbf16, #tpu.memory_space<vmem>>, vector<1x80x8xbf16>
    %40 = vector.shape_cast %39 : vector<1x80x8xbf16> to vector<80x8xbf16>
    %c64 = arith.constant 64 : index
    %c0_34 = arith.constant 0 : index
    %41 = vector.load %arg2[%c64, %c0_34] : memref<72x8xbf16, #tpu.memory_space<vmem>>, vector<8x8xbf16>
    %cst_35 = arith.constant dense<0.000000e+00> : vector<80x8xf32>
    %42 = tpu.matmul %40, %41, %cst_35 {dimension_numbers = #tpu.dot_dimension_numbers<[1], [0], [0], [1], [0, 0, 1, 1], [], []>} : vector<80x8xbf16>, vector<8x8xbf16>, vector<80x8xf32> -> vector<80x8xf32>
    %43 = arith.addf %38, %42 : vector<80x8xf32>
    %c0_36 = arith.constant 0 : index
    %c0_37 = arith.constant 0 : index
    %44 = vector.load %arg3[%c0_36, %c0_37] : memref<8x8xf32, #tpu.memory_space<vmem>>, vector<1x8xf32>
    %45 = vector.broadcast %44 : vector<1x8xf32> to vector<80x8xf32>
    %46 = arith.addf %43, %45 : vector<80x8xf32>
    %c0_38 = arith.constant 0 : index
    %c0_39 = arith.constant 0 : index
    %c0_40 = arith.constant 0 : index
    %47 = vector.load %arg4[%c0_38, %c0_39, %c0_40] : memref<1x80x8xbf16, #tpu.memory_space<vmem>>, vector<1x80x8xbf16>
    %48 = vector.shape_cast %47 : vector<1x80x8xbf16> to vector<80x8xbf16>
    %49 = arith.extf %48 : vector<80x8xbf16> to vector<80x8xf32>
    %50 = arith.addf %46, %49 : vector<80x8xf32>
    %cst_41 = arith.constant 0.000000e+00 : f32
    %51 = vector.broadcast %cst_41 : f32 to vector<80x8xf32>
    %52 = arith.maximumf %50, %51 : vector<80x8xf32>
    %c1_42 = arith.constant 1 : index
    %c0_43 = arith.constant 0 : index
    %53 = vector.load %arg3[%c1_42, %c0_43] : memref<8x8xf32, #tpu.memory_space<vmem>>, vector<1x8xf32>
    %54 = vector.broadcast %53 : vector<1x8xf32> to vector<80x8xf32>
    %55 = arith.mulf %52, %54 : vector<80x8xf32>
    %c2_44 = arith.constant 2 : index
    %c0_45 = arith.constant 0 : index
    %56 = vector.load %arg3[%c2_44, %c0_45] : memref<8x8xf32, #tpu.memory_space<vmem>>, vector<1x8xf32>
    %57 = vector.broadcast %56 : vector<1x8xf32> to vector<80x8xf32>
    %58 = arith.addf %55, %57 : vector<80x8xf32>
    %c0_46 = arith.constant 0 : index
    %c0_47 = arith.constant 0 : index
    %c0_48 = arith.constant 0 : index
    %59 = vector.load %arg5[%c0_46, %c0_47, %c0_48] : memref<1x80x8xf32, #tpu.memory_space<vmem>>, vector<1x80x8xf32>
    %60 = vector.shape_cast %59 : vector<1x80x8xf32> to vector<80x8xf32>
    %61 = vector.shape_cast %58 : vector<80x8xf32> to vector<1x80x8xf32>
    tpu.vector_store %arg5[%c0_46, %c0_47, %c0_48], %61 {strides = array<i32>} : memref<1x80x8xf32, #tpu.memory_space<vmem>>, vector<1x80x8xf32>,
    return
  }
  func.func @transform_0(%arg0: i32) -> (i32, i32, i32) {
    %c0_i32 = arith.constant 0 : i32
    %c0_i32_0 = arith.constant 0 : i32
    %c0_i32_1 = arith.constant 0 : i32
    return %arg0, %c0_i32, %c0_i32_0 : i32, i32, i32
  }
  func.func @transform_1(%arg0: i32) -> (i32, i32) {
    %c0_i32 = arith.constant 0 : i32
    %c0_i32_0 = arith.constant 0 : i32
    %c0_i32_1 = arith.constant 0 : i32
    return %c0_i32, %c0_i32_0 : i32, i32
  }
  func.func @transform_2(%arg0: i32) -> (i32, i32) {
    %c0_i32 = arith.constant 0 : i32
    %c0_i32_0 = arith.constant 0 : i32
    %c0_i32_1 = arith.constant 0 : i32
    return %c0_i32, %c0_i32_0 : i32, i32
  }
  func.func @transform_3(%arg0: i32) -> (i32, i32, i32) {
    %c0_i32 = arith.constant 0 : i32
    %c0_i32_0 = arith.constant 0 : i32
    %c0_i32_1 = arith.constant 0 : i32
    return %arg0, %c0_i32, %c0_i32_0 : i32, i32, i32
  }
  func.func @transform_4(%arg0: i32) -> (i32, i32, i32) {
    %c0_i32 = arith.constant 0 : i32
    %c0_i32_0 = arith.constant 0 : i32
    %c0_i32_1 = arith.constant 0 : i32
    return %arg0, %c0_i32, %c0_i32_0 : i32, i32, i32
  }
}

</mosaic_0001>

<llo_original>
// kernel: a_call__.2
$region0: #{a_call__.2}
  #allocation0 [shape = 'u32[]', space=smem, size = 0x4, offset = 0x4, fixed_abs, tag = 'smem constant byte address 0x4 - core index']
  #allocation1 [shape = 'u32[144,128]{1,0:T(1,128)}', space=vmem, size = 0x12000, scoped, tag = 'internal scratch']
  %s0 = inlined_call_operand.vmem [shape: bf16[128,36], index: 0, kind: input, shape index: {}]
  %s1 = inlined_call_operand.vmem [shape: bf16[36,8], index: 1, kind: input, shape index: {}]
  %s2 = inlined_call_operand.vmem [shape: f32[8,8], index: 2, kind: input, shape index: {}]
  %s3 = inlined_call_operand.vmem [shape: bf16[128,8], index: 3, kind: output, shape index: {}]
  %s4 = sld [smem:[#allocation0]]
  $region22: #{a_call__.2} parent=0
    _
  %s6 = ssub.s32 1, %s4
  %s7 = scalar_select 0, %s6, %s4
  // Predicated region
  $region2: #{a_call__.2} parent=0 // pred_check
    _
  $region3: #{a_call__.2} parent=0 // pred_check_branch
    %9 = sbr.rel (0) target = $region5
  $region4: #{a_call__.2} parent=0 // pred_region
    _
  $region5: #{a_call__.2} parent=0 // pred_fallthru
    _
  // Predicated region
  $region6: #{a_call__.2} parent=0 // pred_check
    _
  $region7: #{a_call__.2} parent=0 // pred_check_branch
    %11 = sbr.rel (0) target = $region9
  $region8: #{a_call__.2} parent=0 // pred_region
    _
  $region9: #{a_call__.2} parent=0 // pred_fallthru
    _
  // Predicated region
  $region10: #{a_call__.2} parent=0 // pred_check
    _
  $region11: #{a_call__.2} parent=0 // pred_check_branch
    %13 = sbr.rel (0) target = $region13
  $region12: #{a_call__.2} parent=0 // pred_region
    _
  $region13: #{a_call__.2} parent=0 // pred_fallthru
    _
  %v15 = vld [vmem:[%s0] sm:$0xf]
  %v16 = vld [vmem:[%s0 + $0x4] sm:$0xf]
  %v17 = vld [vmem:[%s0 + $0x8] sm:$0xf]
  %v18 = vld [vmem:[%s0 + $0xc] sm:$0xf]
  %v19 = vld [vmem:[%s0 + $0x10] sm:$0xf]
  %v20 = vld [vmem:[%s0 + $0x14] sm:$0xf]
  %v21 = vld [vmem:[%s0 + $0x18] sm:$0xf]
  %v22 = vld [vmem:[%s0 + $0x1c] sm:$0xf]
  %v23 = vld [vmem:[%s0 + $0x20] sm:$0xf]
  %v24 = vld [vmem:[%s0 + $0x24] sm:$0xf]
  %v25 = vld [vmem:[%s0 + $0x28] sm:$0xf]
  %v26 = vld [vmem:[%s0 + $0x2c] sm:$0xf]
  %v27 = vld [vmem:[%s0 + $0x30] sm:$0xf]
  %v28 = vld [vmem:[%s0 + $0x34] sm:$0xf]
  %v29 = vld [vmem:[%s0 + $0x38] sm:$0xf]
  %v30 = vld [vmem:[%s0 + $0x3c] sm:$0xf]
  %v31 = vld [vmem:[%s1] sm:$0xf]
  %v32 = vld [vmem:[%s1 + $0x4] sm:$0xf]
  %v33 = vld [vmem:[%s1 + $0x8] sm:$0xf]
  %v34 = vld [vmem:[%s1 + $0xc] sm:$0xf]
  %v35 = vld [vmem:[%s1 + $0x10] sm:$0x3]
  %v36 = vld [vmem:[%s2] sm:$0x1]
  %v37 = vlaneseq
  %v38 = vshrl.u32 %v37, 7
  %v39 = vsub.s32 0, %v38
  %v40 = vrot.slane %v36, %v39
  %v57 = vunpack.c.l.b16 %v15
  %v58 = vunpack.c.l.b16 %v16
  %v59 = vunpack.c.l.b16 %v17
  %v60 = vunpack.c.l.b16 %v18
  %v61 = vunpack.c.l.b16 %v19
  %v62 = vunpack.c.l.b16 %v20
  %v63 = vunpack.c.l.b16 %v21
  %v64 = vunpack.c.l.b16 %v22
  %v65 = vunpack.c.l.b16 %v23
  %v66 = vunpack.c.l.b16 %v24
  %v67 = vunpack.c.l.b16 %v25
  %v68 = vunpack.c.l.b16 %v26
  %v69 = vunpack.c.l.b16 %v27
  %v70 = vunpack.c.l.b16 %v28
  %v71 = vunpack.c.l.b16 %v29
  %v72 = vunpack.c.l.b16 %v30
  %v73 = vpack.c.b16 %v58, %v57
  %v74 = vpack.c.b16 %v60, %v59
  %v75 = vpack.c.b16 %v62, %v61
  %v76 = vpack.c.b16 %v64, %v63
  %v77 = vpack.c.b16 %v66, %v65
  %v78 = vpack.c.b16 %v68, %v67
  %v79 = vpack.c.b16 %v70, %v69
  %v80 = vpack.c.b16 %v72, %v71
  %v86 = vunpack.c.l.b16 %v31
  %v87 = vunpack.c.l.b16 %v32
  %v88 = vunpack.c.l.b16 %v33
  %v89 = vunpack.c.l.b16 %v34
  %v90 = vunpack.c.l.b16 %v35
  %v91 = vpack.c.b16 %v87, %v86
  %v92 = vpack.c.b16 %v89, %v88
  %v93 = vpack.c.b16 %v90, %v90
  %vm96 = vcmask 293888
  %v98 = vsel %vm96, %v73, 0
  %v101 = vsel %vm96, %v74, 0
  %v104 = vsel %vm96, %v75, 0
  %v107 = vsel %vm96, %v76, 0
  %v110 = vsel %vm96, %v77, 0
  %v113 = vsel %vm96, %v78, 0
  %v116 = vsel %vm96, %v79, 0
  %v119 = vsel %vm96, %v80, 0
  %vm121 = vcmask 1041408
  %v123 = vsel %vm121, %v93, 0
  %125 = vmatprep.subr.bf16.mxu0 0
  %126 = vmatpush1.bf16.msra.mxu0 0
  %127 = vmatprep.subr.bf16.mxu0 0
  %128 = vmatpush1.bf16.msra.mxu0 0
  %129 = vmatprep.subr.bf16.mxu0 0
  %130 = vmatpush1.bf16.msra.mxu0 0
  %131 = vmatprep.subr.bf16.mxu0 0
  %132 = vmatpush1.bf16.msra.mxu0 0
  %133 = vmatprep.subr.bf16.mxu0 0
  %134 = vmatpush1.bf16.msra.mxu0 0
  %135 = vmatprep.subr.bf16.mxu0 0
  %136 = vmatpush1.bf16.msra.mxu0 %v123
  %137 = vmatprep.subr.bf16.mxu0 0
  %138 = vmatpush1.bf16.msra.mxu0 %v92
  %139 = vmatprep.subr.bf16.mxu0 0
  %140 = vmatpush1.bf16.msra.mxu0 %v91
  %141 = vmatprep.subr.bf16.mxu0 0
  %142 = vmatpush2.bf16.msra.mxu0 0
  %143 = vmatprep.subr.bf16.mxu0 0
  %144 = vmatpush2.bf16.msra.mxu0 0
  %145 = vmatprep.subr.bf16.mxu0 0
  %146 = vmatpush2.bf16.msra.mxu0 0
  %147 = vmatprep.subr.bf16.mxu0 0
  %148 = vmatpush2.bf16.msra.mxu0 0
  %149 = vmatprep.subr.bf16.mxu0 0
  %150 = vmatpush2.bf16.msra.mxu0 0
  %151 = vmatprep.subr.bf16.mxu0 0
  %152 = vmatpush2.bf16.msra.mxu0 0
  %153 = vmatprep.subr.bf16.mxu0 0
  %154 = vmatpush2.bf16.msra.mxu0 0
  %155 = vmatprep.subr.bf16.mxu0 0
  %156 = vmatpush2.bf16.msra.mxu0 0
  %157 = vmatprep.mubr.bf16.mxu0 0
  %158 = vmatmul.mubr.bf16.gmra.mxu0 %v98
  %v159 = vpop.f32.mrf.mxu0
  %v160 = vadd.f32 %v40, %v159
  %v161 = vpop.f32.mrf.mxu0
  %v162 = vpop.f32.mrf.mxu0
  %v163 = vadd.f32 %v40, %v162
  %v164 = vpop.f32.mrf.mxu0
  %165 = vmatprep.mubr.bf16.mxu0 0
  %166 = vmatmul.mubr.bf16.gmra.mxu0 %v101
  %v167 = vpop.f32.mrf.mxu0
  %v168 = vadd.f32 %v40, %v167
  %v169 = vpop.f32.mrf.mxu0
  %v170 = vpop.f32.mrf.mxu0
  %v171 = vadd.f32 %v40, %v170
  %v172 = vpop.f32.mrf.mxu0
  %173 = vmatprep.mubr.bf16.mxu0 0
  %174 = vmatmul.mubr.bf16.gmra.mxu0 %v104
  %v175 = vpop.f32.mrf.mxu0
  %v176 = vadd.f32 %v40, %v175
  %v177 = vpop.f32.mrf.mxu0
  %v178 = vpop.f32.mrf.mxu0
  %v179 = vadd.f32 %v40, %v178
  %v180 = vpop.f32.mrf.mxu0
  %181 = vmatprep.mubr.bf16.mxu0 0
  %182 = vmatmul.mubr.bf16.gmra.mxu0 %v107
  %v183 = vpop.f32.mrf.mxu0
  %v184 = vadd.f32 %v40, %v183
  %v185 = vpop.f32.mrf.mxu0
  %v186 = vpop.f32.mrf.mxu0
  %v187 = vadd.f32 %v40, %v186
  %v188 = vpop.f32.mrf.mxu0
  %189 = vmatprep.mubr.bf16.mxu0 0
  %190 = vmatmul.mubr.bf16.gmra.mxu0 %v110
  %v191 = vpop.f32.mrf.mxu0
  %v192 = vadd.f32 %v40, %v191
  %v193 = vpop.f32.mrf.mxu0
  %v194 = vpop.f32.mrf.mxu0
  %v195 = vadd.f32 %v40, %v194
  %v196 = vpop.f32.mrf.mxu0
  %197 = vmatprep.mubr.bf16.mxu0 0
  %198 = vmatmul.mubr.bf16.gmra.mxu0 %v113
  %v199 = vpop.f32.mrf.mxu0
  %v200 = vadd.f32 %v40, %v199
  %v201 = vpop.f32.mrf.mxu0
  %v202 = vpop.f32.mrf.mxu0
  %v203 = vadd.f32 %v40, %v202
  %v204 = vpop.f32.mrf.mxu0
  %205 = vmatprep.mubr.bf16.mxu0 0
  %206 = vmatmul.mubr.bf16.gmra.mxu0 %v116
  %v207 = vpop.f32.mrf.mxu0
  %v208 = vadd.f32 %v40, %v207
  %v209 = vpop.f32.mrf.mxu0
  %v210 = vpop.f32.mrf.mxu0
  %v211 = vadd.f32 %v40, %v210
  %v212 = vpop.f32.mrf.mxu0
  %213 = vmatprep.mubr.bf16.mxu0 0
  %214 = vmatmul.mubr.bf16.gmra.mxu0 %v119
  %v215 = vpop.f32.mrf.mxu0
  %v216 = vadd.f32 %v40, %v215
  %v217 = vpop.f32.mrf.mxu0
  %v218 = vpop.f32.mrf.mxu0
  %v219 = vadd.f32 %v40, %v218
  %v220 = vpop.f32.mrf.mxu0
  %221 = vdwg.mxu0
  %v222 = vmax.f32 %v160, 0.0
  %v223 = vmax.f32 %v163, 0.0
  %v224 = vmax.f32 %v168, 0.0
  %v225 = vmax.f32 %v171, 0.0
  %v226 = vmax.f32 %v176, 0.0
  %v227 = vmax.f32 %v179, 0.0
  %v228 = vmax.f32 %v184, 0.0
  %v229 = vmax.f32 %v187, 0.0
  %v230 = vmax.f32 %v192, 0.0
  %v231 = vmax.f32 %v195, 0.0
  %v232 = vmax.f32 %v200, 0.0
  %v233 = vmax.f32 %v203, 0.0
  %v234 = vmax.f32 %v208, 0.0
  %v235 = vmax.f32 %v211, 0.0
  %v236 = vmax.f32 %v216, 0.0
  %v237 = vmax.f32 %v219, 0.0
  %v238 = vld [vmem:[%s2 + $0x1] sm:$0x1]
  %v239 = vlaneseq
  %v240 = vshrl.u32 %v239, 7
  %v241 = vsub.s32 0, %v240
  %v242 = vrot.slane %v238, %v241
  %v243 = vmul.f32 %v222, %v242
  %v244 = vmul.f32 %v223, %v242
  %v245 = vmul.f32 %v224, %v242
  %v246 = vmul.f32 %v225, %v242
  %v247 = vmul.f32 %v226, %v242
  %v248 = vmul.f32 %v227, %v242
  %v249 = vmul.f32 %v228, %v242
  %v250 = vmul.f32 %v229, %v242
  %v251 = vmul.f32 %v230, %v242
  %v252 = vmul.f32 %v231, %v242
  %v253 = vmul.f32 %v232, %v242
  %v254 = vmul.f32 %v233, %v242
  %v255 = vmul.f32 %v234, %v242
  %v256 = vmul.f32 %v235, %v242
  %v257 = vmul.f32 %v236, %v242
  %v258 = vmul.f32 %v237, %v242
  %v259 = vld [vmem:[%s2 + $0x2] sm:$0x1]
  %v260 = vlaneseq
  %v261 = vshrl.u32 %v260, 7
  %v262 = vsub.s32 0, %v261
  %v263 = vrot.slane %v259, %v262
  %v264 = vadd.f32 %v243, %v263
  %v265 = vadd.f32 %v244, %v263
  %v266 = vadd.f32 %v245, %v263
  %v267 = vadd.f32 %v246, %v263
  %v268 = vadd.f32 %v247, %v263
  %v269 = vadd.f32 %v248, %v263
  %v270 = vadd.f32 %v249, %v263
  %v271 = vadd.f32 %v250, %v263
  %v272 = vadd.f32 %v251, %v263
  %v273 = vadd.f32 %v252, %v263
  %v274 = vadd.f32 %v253, %v263
  %v275 = vadd.f32 %v254, %v263
  %v276 = vadd.f32 %v255, %v263
  %v277 = vadd.f32 %v256, %v263
  %v278 = vadd.f32 %v257, %v263
  %v279 = vadd.f32 %v258, %v263
  %v280 = vpack.c.bf16 %v265, %v264
  %v281 = vpack.c.bf16 %v267, %v266
  %v282 = vpack.c.bf16 %v269, %v268
  %v283 = vpack.c.bf16 %v271, %v270
  %v284 = vpack.c.bf16 %v273, %v272
  %v285 = vpack.c.bf16 %v275, %v274
  %v286 = vpack.c.bf16 %v277, %v276
  %v287 = vpack.c.bf16 %v279, %v278
  %v296 = vunpack.c.l.b16 %v280
  %v297 = vunpack.c.h.b16 %v280
  %v298 = vunpack.c.l.b16 %v281
  %v299 = vunpack.c.h.b16 %v281
  %v300 = vunpack.c.l.b16 %v282
  %v301 = vunpack.c.h.b16 %v282
  %v302 = vunpack.c.l.b16 %v283
  %v303 = vunpack.c.h.b16 %v283
  %v304 = vunpack.c.l.b16 %v284
  %v305 = vunpack.c.h.b16 %v284
  %v306 = vunpack.c.l.b16 %v285
  %v307 = vunpack.c.h.b16 %v285
  %v308 = vunpack.c.l.b16 %v286
  %v309 = vunpack.c.h.b16 %v286
  %v310 = vunpack.c.l.b16 %v287
  %v311 = vunpack.c.h.b16 %v287
  %v312 = vpack.c.b16 %v296, %v296
  %v313 = vpack.c.b16 %v297, %v297
  %v314 = vpack.c.b16 %v298, %v298
  %v315 = vpack.c.b16 %v299, %v299
  %v316 = vpack.c.b16 %v300, %v300
  %v317 = vpack.c.b16 %v301, %v301
  %v318 = vpack.c.b16 %v302, %v302
  %v319 = vpack.c.b16 %v303, %v303
  %v320 = vpack.c.b16 %v304, %v304
  %v321 = vpack.c.b16 %v305, %v305
  %v322 = vpack.c.b16 %v306, %v306
  %v323 = vpack.c.b16 %v307, %v307
  %v324 = vpack.c.b16 %v308, %v308
  %v325 = vpack.c.b16 %v309, %v309
  %v326 = vpack.c.b16 %v310, %v310
  %v327 = vpack.c.b16 %v311, %v311
  %vm344 = vcmask 60416
  %345 = vst.msk [vmem:[%s3] sm:$0xf] %vm344, %v312
  %346 = vst.msk [vmem:[%s3 + $0x4] sm:$0xf] %vm344, %v313
  %347 = vst.msk [vmem:[%s3 + $0x8] sm:$0xf] %vm344, %v314
  %348 = vst.msk [vmem:[%s3 + $0xc] sm:$0xf] %vm344, %v315
  %349 = vst.msk [vmem:[%s3 + $0x10] sm:$0xf] %vm344, %v316
  %350 = vst.msk [vmem:[%s3 + $0x14] sm:$0xf] %vm344, %v317
  %351 = vst.msk [vmem:[%s3 + $0x18] sm:$0xf] %vm344, %v318
  %352 = vst.msk [vmem:[%s3 + $0x1c] sm:$0xf] %vm344, %v319
  %353 = vst.msk [vmem:[%s3 + $0x20] sm:$0xf] %vm344, %v320
  %354 = vst.msk [vmem:[%s3 + $0x24] sm:$0xf] %vm344, %v321
  %355 = vst.msk [vmem:[%s3 + $0x28] sm:$0xf] %vm344, %v322
  %356 = vst.msk [vmem:[%s3 + $0x2c] sm:$0xf] %vm344, %v323
  %357 = vst.msk [vmem:[%s3 + $0x30] sm:$0xf] %vm344, %v324
  %358 = vst.msk [vmem:[%s3 + $0x34] sm:$0xf] %vm344, %v325
  %359 = vst.msk [vmem:[%s3 + $0x38] sm:$0xf] %vm344, %v326
  %360 = vst.msk [vmem:[%s3 + $0x3c] sm:$0xf] %vm344, %v327
  // Predicated region
  $region14: #{a_call__.2} parent=0 // pred_check
    _
  $region15: #{a_call__.2} parent=0 // pred_check_branch
    %362 = sbr.rel (0) target = $region17
  $region16: #{a_call__.2} parent=0 // pred_region
    _
  $region17: #{a_call__.2} parent=0 // pred_fallthru
    _
  // Predicated region
  $region18: #{a_call__.2} parent=0 // pred_check
    _
  $region19: #{a_call__.2} parent=0 // pred_check_branch
    %364 = sbr.rel (0) target = $region21
  $region20: #{a_call__.2} parent=0 // pred_region
    _
  $region21: #{a_call__.2} parent=0 // pred_fallthru
    _

// kernel: a_call__.3
$region0: #{a_call__.3}
  #allocation0 [shape = 'u32[]', space=smem, size = 0x4, offset = 0x4, fixed_abs, tag = 'smem constant byte address 0x4 - core index']
  #allocation1 [shape = 'u32[144,128]{1,0:T(1,128)}', space=vmem, size = 0x12000, scoped, tag = 'internal scratch']
  %s0 = inlined_call_operand.vmem [shape: bf16[2,108,8], index: 0, kind: input, shape index: {}]
  %s1 = inlined_call_operand.vmem [shape: bf16[72,8], index: 1, kind: input, shape index: {}]
  %s2 = inlined_call_operand.vmem [shape: f32[8,8], index: 2, kind: input, shape index: {}]
  %s3 = inlined_call_operand.vmem [shape: bf16[2,80,8], index: 3, kind: input, shape index: {}]
  %s4 = inlined_call_operand.vmem [shape: f32[2,80,8], index: 4, kind: output, shape index: {}]
  %s5 = sld [smem:[#allocation0]]
  $region49: #{a_call__.3} parent=0
    _
  %s7 = ssub.s32 1, %s5
  %s8 = scalar_select 0, %s7, %s5
  loop: start=0, step=1, limit=4
  $region2: #{a_call__.3} parent=0 // loop_pre_header
    _
  $region3: #{a_call__.3} parent=0 // loop_header
    %s10 = sphi 0, %s14
    %p11 = scmp.ge.s32.totalorder %s10, 4
    %s20 = sphi 0, %s22
    %s23 = sphi 0, %s20
    %s24 = sphi 0, %s23
    %s40 = sphi 0, %s24
    %s44 = sphi 0, %s44
    %s46 = sphi 0, %s44
    %s47 = sphi 0, %s46
    %s61 = sphi 0, %s47
    %s65 = sphi 0, %s65
    %s67 = sphi 0, %s65
    %s68 = sphi 0, %s67
    %s82 = sphi 0, %s68
    %s88 = sphi 0, %s90
    %s91 = sphi 0, %s88
    %s92 = sphi 0, %s91
    %s108 = sphi 0, %s92
    %s114 = sphi 0, %s116
    %s117 = sphi 0, %s114
    %s118 = sphi 0, %s117
    %s134 = sphi 0, %s118
  $region4: #{a_call__.3} parent=0 // loop_header_branch
    %13 = sbr.rel (%p11) target = $region8
  $region5: #{a_call__.3} parent=0 // loop_body
    %s15 = ssub.s32 %s10, 1
    %s16 = ssub.s32 %s10, 2
    %s17 = sadd.s32 %s10, 1
    %s18 = ssub.s32 %s10, %s17
    %p19 = scmp.eq.s32.totalorder %s18, 0
    %s21 = sadd.s32 %s20, 1
    %s22 = scalar_select %p19, %s20, %s21
    %p25 = pneg %p19
    %p26 = scmp.eq.s32.totalorder %s10, 1
    %p27 = por %p25, %p26
    %p28 = scmp.ne.s32.totalorder %s20, %s23
    %p29 = scmp.eq.s32.totalorder %s10, 0
    %p30 = por %p28, %p29
    %p31 = scmp.ne.s32.totalorder %s20, %s23
    %p32 = scmp.eq.s32.totalorder %s15, 1
    %p33 = por %p31, %p32
    %p34 = scmp.ne.s32.totalorder %s23, %s24
    %p35 = scmp.eq.s32.totalorder %s15, 0
    %p36 = por %p34, %p35
    %p37 = scmp.ne.s32.totalorder %s23, %s24
    %p38 = scmp.eq.s32.totalorder %s16, 1
    %p39 = por %p37, %p38
    %p41 = scmp.ne.s32.totalorder %s24, %s40
    %p42 = scmp.eq.s32.totalorder %s16, 0
    %p43 = por %p41, %p42
    %s45 = sadd.s32 %s44, 1
    %p48 = scmp.eq.s32.totalorder %s10, 1
    %p49 = scmp.ne.s32.totalorder %s44, %s46
    %p50 = scmp.eq.s32.totalorder %s10, 0
    %p51 = por %p49, %p50
    %p52 = scmp.ne.s32.totalorder %s44, %s46
    %p53 = scmp.eq.s32.totalorder %s15, 1
    %p54 = por %p52, %p53
    %p55 = scmp.ne.s32.totalorder %s46, %s47
    %p56 = scmp.eq.s32.totalorder %s15, 0
    %p57 = por %p55, %p56
    %p58 = scmp.ne.s32.totalorder %s46, %s47
    %p59 = scmp.eq.s32.totalorder %s16, 1
    %p60 = por %p58, %p59
    %p62 = scmp.ne.s32.totalorder %s47, %s61
    %p63 = scmp.eq.s32.totalorder %s16, 0
    %p64 = por %p62, %p63
    %s66 = sadd.s32 %s65, 1
    %p69 = scmp.eq.s32.totalorder %s10, 1
    %p70 = scmp.ne.s32.totalorder %s65, %s67
    %p71 = scmp.eq.s32.totalorder %s10, 0
    %p72 = por %p70, %p71
    %p73 = scmp.ne.s32.totalorder %s65, %s67
    %p74 = scmp.eq.s32.totalorder %s15, 1
    %p75 = por %p73, %p74
    %p76 = scmp.ne.s32.totalorder %s67, %s68
    %p77 = scmp.eq.s32.totalorder %s15, 0
    %p78 = por %p76, %p77
    %p79 = scmp.ne.s32.totalorder %s67, %s68
    %p80 = scmp.eq.s32.totalorder %s16, 1
    %p81 = por %p79, %p80
    %p83 = scmp.ne.s32.totalorder %s68, %s82
    %p84 = scmp.eq.s32.totalorder %s16, 0
    %p85 = por %p83, %p84
    %s86 = ssub.s32 %s10, %s17
    %p87 = scmp.eq.s32.totalorder %s86, 0
    %s89 = sadd.s32 %s88, 1
    %s90 = scalar_select %p87, %s88, %s89
    %p93 = pneg %p87
    %p94 = scmp.eq.s32.totalorder %s10, 1
    %p95 = por %p93, %p94
    %p96 = scmp.ne.s32.totalorder %s88, %s91
    %p97 = scmp.eq.s32.totalorder %s10, 0
    %p98 = por %p96, %p97
    %p99 = scmp.ne.s32.totalorder %s88, %s91
    %p100 = scmp.eq.s32.totalorder %s15, 1
    %p101 = por %p99, %p100
    %p102 = scmp.ne.s32.totalorder %s91, %s92
    %p103 = scmp.eq.s32.totalorder %s15, 0
    %p104 = por %p102, %p103
    %p105 = scmp.ne.s32.totalorder %s91, %s92
    %p106 = scmp.eq.s32.totalorder %s16, 1
    %p107 = por %p105, %p106
    %p109 = scmp.ne.s32.totalorder %s92, %s108
    %p110 = scmp.eq.s32.totalorder %s16, 0
    %p111 = por %p109, %p110
    %s112 = ssub.s32 %s10, %s17
    %p113 = scmp.eq.s32.totalorder %s112, 0
    %s115 = sadd.s32 %s114, 1
    %s116 = scalar_select %p113, %s114, %s115
    %p119 = pneg %p113
    %p120 = scmp.eq.s32.totalorder %s10, 1
    %p121 = por %p119, %p120
    %p122 = scmp.ne.s32.totalorder %s114, %s117
    %p123 = scmp.eq.s32.totalorder %s10, 0
    %p124 = por %p122, %p123
    %p125 = scmp.ne.s32.totalorder %s114, %s117
    %p126 = scmp.eq.s32.totalorder %s15, 1
    %p127 = por %p125, %p126
    %p128 = scmp.ne.s32.totalorder %s117, %s118
    %p129 = scmp.eq.s32.totalorder %s15, 0
    %p130 = por %p128, %p129
    %p131 = scmp.ne.s32.totalorder %s117, %s118
    %p132 = scmp.eq.s32.totalorder %s16, 1
    %p133 = por %p131, %p132
    %p135 = scmp.ne.s32.totalorder %s118, %s134
    %p136 = scmp.eq.s32.totalorder %s16, 0
    %p137 = por %p135, %p136
    %p138 = scmp.le.s32.totalorder 1, %s10
    %p139 = scmp.lt.s32.totalorder %s10, 3
    %p140 = pnand %p138, %p139
    %p141 = pneg %p140
    // Predicated region
    $region9: #{a_call__.3} parent=5 // pred_check
      _
    $region10: #{a_call__.3} parent=5 // pred_check_branch
      %143 = sbr.rel (%p140) target = $region12
    $region11: #{a_call__.3} parent=5 // pred_region
      %s144 = ssub.s32 %s10, 1
      // Predicated region
      $region13: #{a_call__.3} parent=11 // pred_check
        %p145 = pneg %p57
      $region14: #{a_call__.3} parent=11 // pred_check_branch
        %147 = sbr.rel (%p145) target = $region16
      $region15: #{a_call__.3} parent=11 // pred_region
        _
      $region16: #{a_call__.3} parent=11 // pred_fallthru
        _
      // Predicated region
      $region17: #{a_call__.3} parent=11 // pred_check
        %p148 = pneg %p78
      $region18: #{a_call__.3} parent=11 // pred_check_branch
        %150 = sbr.rel (%p148) target = $region20
      $region19: #{a_call__.3} parent=11 // pred_region
        _
      $region20: #{a_call__.3} parent=11 // pred_fallthru
        _
    $region12: #{a_call__.3} parent=5 // pred_fallthru
      _
    %p151 = scmp.lt.s32.totalorder %s10, 2
    // Predicated region
    $region21: #{a_call__.3} parent=5 // pred_check
      %p152 = pneg %p151
    $region22: #{a_call__.3} parent=5 // pred_check_branch
      %154 = sbr.rel (%p152) target = $region24
    $region23: #{a_call__.3} parent=5 // pred_region
      // Predicated region
      $region25: #{a_call__.3} parent=23 // pred_check
        %p155 = pneg %p30
      $region26: #{a_call__.3} parent=23 // pred_check_branch
        %157 = sbr.rel (%p155) target = $region28
      $region27: #{a_call__.3} parent=23 // pred_region
        %p158 = scmp.lt.s32.totalorder %s10, 1
        %s159 = scalar_select %p158, %s10, 1
        %s160 = smul.addr %s159, 14
        %s161 = smul.addr %s160, 4
        %s162 = scalar_lea.vmem %s0, %s161
      $region28: #{a_call__.3} parent=23 // pred_fallthru
        _
      // Predicated region
      $region29: #{a_call__.3} parent=23 // pred_check
        %p163 = pneg %p98
      $region30: #{a_call__.3} parent=23 // pred_check_branch
        %165 = sbr.rel (%p163) target = $region32
      $region31: #{a_call__.3} parent=23 // pred_region
        %p166 = scmp.lt.s32.totalorder %s10, 1
        %s167 = scalar_select %p166, %s10, 1
        %s168 = smul.addr %s167, 10
        %s169 = smul.addr %s168, 4
        %s170 = scalar_lea.vmem %s3, %s169
      $region32: #{a_call__.3} parent=23 // pred_fallthru
        _
    $region24: #{a_call__.3} parent=5 // pred_fallthru
      _
    %p171 = scmp.le.s32.totalorder 1, %s10
    %p172 = scmp.lt.s32.totalorder %s10, 3
    %p173 = pnand %p171, %p172
    %p174 = pneg %p173
    // Predicated region
    $region33: #{a_call__.3} parent=5 // pred_check
      _
    $region34: #{a_call__.3} parent=5 // pred_check_branch
      %176 = sbr.rel (%p173) target = $region36
    $region35: #{a_call__.3} parent=5 // pred_region
      %s177 = ssub.s32 %s10, 1
      %p178 = scmp.lt.s32.totalorder %s15, 1
      %s179 = scalar_select %p178, %s15, 1
      %s180 = smul.addr %s179, 14
      %s181 = smul.addr %s180, 4
      %s182 = scalar_lea.vmem %s0, %s181
      %p183 = pneg %p36
      %p184 = pneg %p33
      %p185 = pneg %p57
      %p186 = pneg %p54
      %p187 = pneg %p78
      %p188 = pneg %p75
      %p189 = scmp.lt.s32.totalorder %s15, 1
      %s190 = scalar_select %p189, %s15, 1
      %s191 = smul.addr %s190, 10
      %s192 = smul.addr %s191, 4
      %s193 = scalar_lea.vmem %s3, %s192
      %p194 = pneg %p104
      %p195 = pneg %p101
      %p196 = pneg %p130
      %p197 = pneg %p127
      %p198 = scmp.lt.s32.totalorder %s15, 1
      %s199 = scalar_select %p198, %s15, 1
      %s200 = smul.addr %s199, 10
      %s201 = smul.addr %s200, 8
      %s202 = scalar_lea.vmem %s4, %s201
      %p203 = scmp.lt.s32.totalorder %s15, 1
      %s204 = scalar_select %p203, %s15, 1
      %s205 = smul.addr %s204, 14
      %s206 = smul.addr %s205, 4
      %s207 = scalar_lea.vmem %s0, %s206
      %p208 = scmp.lt.s32.totalorder %s15, 1
      %s209 = scalar_select %p208, %s15, 1
      %s210 = smul.addr %s209, 10
      %s211 = smul.addr %s210, 4
      %s212 = scalar_lea.vmem %s3, %s211
      %p213 = scmp.lt.s32.totalorder %s15, 1
      %s214 = scalar_select %p213, %s15, 1
      %s215 = smul.addr %s214, 10
      %s216 = smul.addr %s215, 8
      %s217 = scalar_lea.vmem %s4, %s216
      %v219 = vld [vmem:[%s207] sm:$0xf]
      %v220 = vld [vmem:[%s207 + $0x4] sm:$0xf]
      %v221 = vld [vmem:[%s207 + $0x8] sm:$0xf]
      %v222 = vld [vmem:[%s207 + $0xc] sm:$0xf]
      %v223 = vld [vmem:[%s207 + $0x10] sm:$0xf]
      %v224 = vld [vmem:[%s207 + $0x14] sm:$0xf]
      %v225 = vld [vmem:[%s207 + $0x18] sm:$0xf]
      %v226 = vld [vmem:[%s207 + $0x1c] sm:$0xf]
      %v227 = vld [vmem:[%s207 + $0x20] sm:$0xf]
      %v228 = vld [vmem:[%s207 + $0x24] sm:$0xf]
      %v229 = vld [vmem:[%s1] sm:$0xf]
      %v230 = vld [vmem:[%s207 + $0x28] sm:$0x1]
      %v231 = vld [vmem:[%s1 + $0x4] sm:$0xf]
      %v243 = vunpack.c.l.b16 %v219
      %v244 = vunpack.c.l.b16 %v220
      %v245 = vunpack.c.l.b16 %v221
      %v246 = vunpack.c.l.b16 %v222
      %v247 = vunpack.c.l.b16 %v223
      %v248 = vunpack.c.l.b16 %v224
      %v249 = vunpack.c.l.b16 %v225
      %v250 = vunpack.c.l.b16 %v226
      %v251 = vunpack.c.l.b16 %v227
      %v252 = vunpack.c.l.b16 %v228
      %v253 = vunpack.c.l.b16 %v230
      %v254 = vpack.c.b16 %v244, %v243
      %v255 = vpack.c.b16 %v246, %v245
      %v256 = vpack.c.b16 %v248, %v247
      %v257 = vpack.c.b16 %v250, %v249
      %v258 = vpack.c.b16 %v252, %v251
      %v259 = vpack.c.b16 %v253, %v253
      %vm260 = vsmask.f32 7424
      %v262 = vshrl.u32 %v254, 16
      %v264 = vshll.u32 %v254, 16
      %v266 = vrot.slane %v264, 1
      %v267 = vor.u32 %v262, %v266
      %v269 = vshll.u32 %v255, 16
      %v271 = vrot.slane %v269, 1
      %v272 = vsel %vm260, %v267, %v271
      %v273 = vshrl.u32 %v255, 16
      %v275 = vor.u32 %v273, %v271
      %v277 = vshll.u32 %v256, 16
      %v279 = vrot.slane %v277, 1
      %v280 = vsel %vm260, %v275, %v279
      %v281 = vshrl.u32 %v256, 16
      %v283 = vor.u32 %v281, %v279
      %v285 = vshll.u32 %v257, 16
      %v287 = vrot.slane %v285, 1
      %v288 = vsel %vm260, %v283, %v287
      %v289 = vshrl.u32 %v257, 16
      %v291 = vor.u32 %v289, %v287
      %v293 = vshll.u32 %v258, 16
      %v295 = vrot.slane %v293, 1
      %v296 = vsel %vm260, %v291, %v295
      %v297 = vshrl.u32 %v258, 16
      %v299 = vor.u32 %v297, %v295
      %v301 = vshll.u32 %v259, 16
      %v303 = vrot.slane %v301, 1
      %v304 = vsel %vm260, %v299, %v303
      %vm305 = vcmask 64512
      %v307 = vsel %vm305, %v272, 0
      %v310 = vsel %vm305, %v280, 0
      %v313 = vsel %vm305, %v288, 0
      %v316 = vsel %vm305, %v296, 0
      %v319 = vsel %vm305, %v304, 0
      %vm321 = vcmask 1043456
      %v323 = vsel %vm321, %v231, 0
      %325 = vmatprep.subr.bf16.mxu0 0
      %326 = vmatpush1.bf16.msra.mxu0 0
      %327 = vmatprep.subr.bf16.mxu0 0
      %328 = vmatpush1.bf16.msra.mxu0 0
      %329 = vmatprep.subr.bf16.mxu0 0
      %330 = vmatpush1.bf16.msra.mxu0 0
      %331 = vmatprep.subr.bf16.mxu0 0
      %332 = vmatpush1.bf16.msra.mxu0 0
      %333 = vmatprep.subr.bf16.mxu0 0
      %334 = vmatpush1.bf16.msra.mxu0 0
      %335 = vmatprep.subr.bf16.mxu0 0
      %336 = vmatpush1.bf16.msra.mxu0 0
      %337 = vmatprep.subr.bf16.mxu0 0
      %338 = vmatpush1.bf16.msra.mxu0 0
      %339 = vmatprep.subr.bf16.mxu0 0
      %340 = vmatpush1.bf16.msra.mxu0 %v323
      %341 = vmatprep.subr.bf16.mxu0 0
      %342 = vmatpush2.bf16.msra.mxu0 0
      %343 = vmatprep.subr.bf16.mxu0 0
      %344 = vmatpush2.bf16.msra.mxu0 0
      %345 = vmatprep.subr.bf16.mxu0 0
      %346 = vmatpush2.bf16.msra.mxu0 0
      %347 = vmatprep.subr.bf16.mxu0 0
      %348 = vmatpush2.bf16.msra.mxu0 0
      %349 = vmatprep.subr.bf16.mxu0 0
      %350 = vmatpush2.bf16.msra.mxu0 0
      %351 = vmatprep.subr.bf16.mxu0 0
      %352 = vmatpush2.bf16.msra.mxu0 0
      %353 = vmatprep.subr.bf16.mxu0 0
      %354 = vmatpush2.bf16.msra.mxu0 0
      %355 = vmatprep.subr.bf16.mxu0 0
      %356 = vmatpush2.bf16.msra.mxu0 0
      %357 = vmatprep.mubr.bf16.mxu0 0
      %358 = vmatmul.mubr.bf16.gmra.mxu0 %v307
      %v359 = vpop.f32.mrf.mxu0
      %v360 = vadd.f32 0.0, %v359
      %v361 = vpop.f32.mrf.mxu0
      %v362 = vpop.f32.mrf.mxu0
      %v363 = vadd.f32 0.0, %v362
      %v364 = vpop.f32.mrf.mxu0
      %365 = vmatprep.mubr.bf16.mxu0 0
      %366 = vmatmul.mubr.bf16.gmra.mxu0 %v310
      %v367 = vpop.f32.mrf.mxu0
      %v368 = vadd.f32 0.0, %v367
      %v369 = vpop.f32.mrf.mxu0
      %v370 = vpop.f32.mrf.mxu0
      %v371 = vadd.f32 0.0, %v370
      %v372 = vpop.f32.mrf.mxu0
      %373 = vmatprep.mubr.bf16.mxu0 0
      %374 = vmatmul.mubr.bf16.gmra.mxu0 %v313
      %v375 = vpop.f32.mrf.mxu0
      %v376 = vadd.f32 0.0, %v375
      %v377 = vpop.f32.mrf.mxu0
      %v378 = vpop.f32.mrf.mxu0
      %v379 = vadd.f32 0.0, %v378
      %v380 = vpop.f32.mrf.mxu0
      %381 = vmatprep.mubr.bf16.mxu0 0
      %382 = vmatmul.mubr.bf16.gmra.mxu0 %v316
      %v383 = vpop.f32.mrf.mxu0
      %v384 = vadd.f32 0.0, %v383
      %v385 = vpop.f32.mrf.mxu0
      %v386 = vpop.f32.mrf.mxu0
      %v387 = vadd.f32 0.0, %v386
      %v388 = vpop.f32.mrf.mxu0
      %389 = vmatprep.mubr.bf16.mxu0 0
      %390 = vmatmul.mubr.bf16.gmra.mxu0 %v319
      %v391 = vpop.f32.mrf.mxu0
      %v392 = vadd.f32 0.0, %v391
      %v393 = vpop.f32.mrf.mxu0
      %v394 = vpop.f32.mrf.mxu0
      %v395 = vadd.f32 0.0, %v394
      %v396 = vpop.f32.mrf.mxu0
      %397 = vdwg.mxu0
      %v398 = vsel %vm305, %v254, 0
      %v400 = vsel %vm305, %v255, 0
      %v402 = vsel %vm305, %v256, 0
      %v404 = vsel %vm305, %v257, 0
      %v406 = vsel %vm305, %v258, 0
      %v409 = vsel %vm321, %v229, 0
      %411 = vmatprep.subr.bf16.mxu0 0
      %412 = vmatpush1.bf16.msra.mxu0 0
      %413 = vmatprep.subr.bf16.mxu0 0
      %414 = vmatpush1.bf16.msra.mxu0 0
      %415 = vmatprep.subr.bf16.mxu0 0
      %416 = vmatpush1.bf16.msra.mxu0 0
      %417 = vmatprep.subr.bf16.mxu0 0
      %418 = vmatpush1.bf16.msra.mxu0 0
      %419 = vmatprep.subr.bf16.mxu0 0
      %420 = vmatpush1.bf16.msra.mxu0 0
      %421 = vmatprep.subr.bf16.mxu0 0
      %422 = vmatpush1.bf16.msra.mxu0 0
      %423 = vmatprep.subr.bf16.mxu0 0
      %424 = vmatpush1.bf16.msra.mxu0 0
      %425 = vmatprep.subr.bf16.mxu0 0
      %426 = vmatpush1.bf16.msra.mxu0 %v409
      %427 = vmatprep.subr.bf16.mxu0 0
      %428 = vmatpush2.bf16.msra.mxu0 0
      %429 = vmatprep.subr.bf16.mxu0 0
      %430 = vmatpush2.bf16.msra.mxu0 0
      %431 = vmatprep.subr.bf16.mxu0 0
      %432 = vmatpush2.bf16.msra.mxu0 0
      %433 = vmatprep.subr.bf16.mxu0 0
      %434 = vmatpush2.bf16.msra.mxu0 0
      %435 = vmatprep.subr.bf16.mxu0 0
      %436 = vmatpush2.bf16.msra.mxu0 0
      %437 = vmatprep.subr.bf16.mxu0 0
      %438 = vmatpush2.bf16.msra.mxu0 0
      %439 = vmatprep.subr.bf16.mxu0 0
      %440 = vmatpush2.bf16.msra.mxu0 0
      %441 = vmatprep.subr.bf16.mxu0 0
      %442 = vmatpush2.bf16.msra.mxu0 0
      %443 = vmatprep.mubr.bf16.mxu0 0
      %444 = vmatmul.mubr.bf16.gmra.mxu0 %v398
      %v445 = vpop.f32.mrf.mxu0
      %v446 = vadd.f32 %v360, %v445
      %v447 = vpop.f32.mrf.mxu0
      %v448 = vpop.f32.mrf.mxu0
      %v449 = vadd.f32 %v363, %v448
      %v450 = vpop.f32.mrf.mxu0
      %451 = vmatprep.mubr.bf16.mxu0 0
      %452 = vmatmul.mubr.bf16.gmra.mxu0 %v400
      %v453 = vpop.f32.mrf.mxu0
      %v454 = vadd.f32 %v368, %v453
      %v455 = vpop.f32.mrf.mxu0
      %v456 = vpop.f32.mrf.mxu0
      %v457 = vadd.f32 %v371, %v456
      %v458 = vpop.f32.mrf.mxu0
      %459 = vmatprep.mubr.bf16.mxu0 0
      %460 = vmatmul.mubr.bf16.gmra.mxu0 %v402
      %v461 = vpop.f32.mrf.mxu0
      %v462 = vadd.f32 %v376, %v461
      %v463 = vpop.f32.mrf.mxu0
      %v464 = vpop.f32.mrf.mxu0
      %v465 = vadd.f32 %v379, %v464
      %v466 = vpop.f32.mrf.mxu0
      %467 = vmatprep.mubr.bf16.mxu0 0
      %468 = vmatmul.mubr.bf16.gmra.mxu0 %v404
      %v469 = vpop.f32.mrf.mxu0
      %v470 = vadd.f32 %v384, %v469
      %v471 = vpop.f32.mrf.mxu0
      %v472 = vpop.f32.mrf.mxu0
      %v473 = vadd.f32 %v387, %v472
      %v474 = vpop.f32.mrf.mxu0
      %475 = vmatprep.mubr.bf16.mxu0 0
      %476 = vmatmul.mubr.bf16.gmra.mxu0 %v406
      %v477 = vpop.f32.mrf.mxu0
      %v478 = vadd.f32 %v392, %v477
      %v479 = vpop.f32.mrf.mxu0
      %v480 = vpop.f32.mrf.mxu0
      %v481 = vadd.f32 %v395, %v480
      %v482 = vpop.f32.mrf.mxu0
      %483 = vdwg.mxu0
      %v484 = vld [vmem:[%s207] sm:$0xe]
      %v485 = vld [vmem:[%s1 + $0x8] sm:$0xf]
      %v487 = vunpack.c.l.b16 %v484
      %v488 = vpack.c.b16 %v244, %v487
      %vm489 = vcmask 1046528
      %v490 = vrot.slane %v488, 1
      %v491 = vrot.slane %v255, 1
      %v492 = vsel %vm489, %v490, %v491
      %v493 = vrot.slane %v256, 1
      %v494 = vsel %vm489, %v491, %v493
      %v495 = vrot.slane %v257, 1
      %v496 = vsel %vm489, %v493, %v495
      %v497 = vrot.slane %v258, 1
      %v498 = vsel %vm489, %v495, %v497
      %v499 = vrot.slane %v259, 1
      %v500 = vsel %vm489, %v497, %v499
      %v502 = vsel %vm305, %v492, 0
      %v505 = vsel %vm305, %v494, 0
      %v508 = vsel %vm305, %v496, 0
      %v511 = vsel %vm305, %v498, 0
      %v514 = vsel %vm305, %v500, 0
      %v517 = vsel %vm321, %v485, 0
      %519 = vmatprep.subr.bf16.mxu0 0
      %520 = vmatpush1.bf16.msra.mxu0 0
      %521 = vmatprep.subr.bf16.mxu0 0
      %522 = vmatpush1.bf16.msra.mxu0 0
      %523 = vmatprep.subr.bf16.mxu0 0
      %524 = vmatpush1.bf16.msra.mxu0 0
      %525 = vmatprep.subr.bf16.mxu0 0
      %526 = vmatpush1.bf16.msra.mxu0 0
      %527 = vmatprep.subr.bf16.mxu0 0
      %528 = vmatpush1.bf16.msra.mxu0 0
      %529 = vmatprep.subr.bf16.mxu0 0
      %530 = vmatpush1.bf16.msra.mxu0 0
      %531 = vmatprep.subr.bf16.mxu0 0
      %532 = vmatpush1.bf16.msra.mxu0 0
      %533 = vmatprep.subr.bf16.mxu0 0
      %534 = vmatpush1.bf16.msra.mxu0 %v517
      %535 = vmatprep.subr.bf16.mxu0 0
      %536 = vmatpush2.bf16.msra.mxu0 0
      %537 = vmatprep.subr.bf16.mxu0 0
      %538 = vmatpush2.bf16.msra.mxu0 0
      %539 = vmatprep.subr.bf16.mxu0 0
      %540 = vmatpush2.bf16.msra.mxu0 0
      %541 = vmatprep.subr.bf16.mxu0 0
      %542 = vmatpush2.bf16.msra.mxu0 0
      %543 = vmatprep.subr.bf16.mxu0 0
      %544 = vmatpush2.bf16.msra.mxu0 0
      %545 = vmatprep.subr.bf16.mxu0 0
      %546 = vmatpush2.bf16.msra.mxu0 0
      %547 = vmatprep.subr.bf16.mxu0 0
      %548 = vmatpush2.bf16.msra.mxu0 0
      %549 = vmatprep.subr.bf16.mxu0 0
      %550 = vmatpush2.bf16.msra.mxu0 0
      %551 = vmatprep.mubr.bf16.mxu0 0
      %552 = vmatmul.mubr.bf16.gmra.mxu0 %v502
      %v553 = vpop.f32.mrf.mxu0
      %v554 = vadd.f32 0.0, %v553
      %v555 = vpop.f32.mrf.mxu0
      %v556 = vpop.f32.mrf.mxu0
      %v557 = vadd.f32 0.0, %v556
      %v558 = vpop.f32.mrf.mxu0
      %559 = vmatprep.mubr.bf16.mxu0 0
      %560 = vmatmul.mubr.bf16.gmra.mxu0 %v505
      %v561 = vpop.f32.mrf.mxu0
      %v562 = vadd.f32 0.0, %v561
      %v563 = vpop.f32.mrf.mxu0
      %v564 = vpop.f32.mrf.mxu0
      %v565 = vadd.f32 0.0, %v564
      %v566 = vpop.f32.mrf.mxu0
      %567 = vmatprep.mubr.bf16.mxu0 0
      %568 = vmatmul.mubr.bf16.gmra.mxu0 %v508
      %v569 = vpop.f32.mrf.mxu0
      %v570 = vadd.f32 0.0, %v569
      %v571 = vpop.f32.mrf.mxu0
      %v572 = vpop.f32.mrf.mxu0
      %v573 = vadd.f32 0.0, %v572
      %v574 = vpop.f32.mrf.mxu0
      %575 = vmatprep.mubr.bf16.mxu0 0
      %576 = vmatmul.mubr.bf16.gmra.mxu0 %v511
      %v577 = vpop.f32.mrf.mxu0
      %v578 = vadd.f32 0.0, %v577
      %v579 = vpop.f32.mrf.mxu0
      %v580 = vpop.f32.mrf.mxu0
      %v581 = vadd.f32 0.0, %v580
      %v582 = vpop.f32.mrf.mxu0
      %583 = vmatprep.mubr.bf16.mxu0 0
      %584 = vmatmul.mubr.bf16.gmra.mxu0 %v514
      %v585 = vpop.f32.mrf.mxu0
      %v586 = vadd.f32 0.0, %v585
      %v587 = vpop.f32.mrf.mxu0
      %v588 = vpop.f32.mrf.mxu0
      %v589 = vadd.f32 0.0, %v588
      %v590 = vpop.f32.mrf.mxu0
      %591 = vdwg.mxu0
      %v592 = vadd.f32 %v446, %v554
      %v593 = vadd.f32 %v449, %v557
      %v594 = vadd.f32 %v454, %v562
      %v595 = vadd.f32 %v457, %v565
      %v596 = vadd.f32 %v462, %v570
      %v597 = vadd.f32 %v465, %v573
      %v598 = vadd.f32 %v470, %v578
      %v599 = vadd.f32 %v473, %v581
      %v600 = vadd.f32 %v478, %v586
      %v601 = vadd.f32 %v481, %v589
      %v602 = vld [vmem:[%s207 + $0x4] sm:$0xe]
      %v603 = vld [vmem:[%s207 + $0x8] sm:$0xf]
      %v604 = vld [vmem:[%s207 + $0xc] sm:$0xf]
      %v605 = vld [vmem:[%s207 + $0x10] sm:$0xf]
      %v606 = vld [vmem:[%s207 + $0x14] sm:$0xf]
      %v607 = vld [vmem:[%s207 + $0x18] sm:$0xf]
      %v608 = vld [vmem:[%s207 + $0x1c] sm:$0xf]
      %v609 = vld [vmem:[%s207 + $0x20] sm:$0xf]
      %v610 = vld [vmem:[%s207 + $0x24] sm:$0xf]
      %v611 = vld [vmem:[%s207 + $0x28] sm:$0xf]
      %v612 = vld [vmem:[%s207 + $0x2c] sm:$0x1]
      %v613 = vld [vmem:[%s1 + $0xc] sm:$0xf]
      %v625 = vunpack.c.l.b16 %v602
      %v626 = vunpack.c.l.b16 %v603
      %v627 = vunpack.c.l.b16 %v604
      %v628 = vunpack.c.l.b16 %v605
      %v629 = vunpack.c.l.b16 %v606
      %v630 = vunpack.c.l.b16 %v607
      %v631 = vunpack.c.l.b16 %v608
      %v632 = vunpack.c.l.b16 %v609
      %v633 = vunpack.c.l.b16 %v610
      %v634 = vunpack.c.l.b16 %v611
      %v635 = vunpack.c.l.b16 %v612
      %v636 = vpack.c.b16 %v626, %v625
      %v637 = vpack.c.b16 %v628, %v627
      %v638 = vpack.c.b16 %v630, %v629
      %v639 = vpack.c.b16 %v632, %v631
      %v640 = vpack.c.b16 %v634, %v633
      %v641 = vpack.c.b16 %v635, %v635
      %v642 = vrot.slane %v636, 1
      %v643 = vrot.slane %v637, 1
      %v644 = vsel %vm489, %v642, %v643
      %v645 = vrot.slane %v638, 1
      %v646 = vsel %vm489, %v643, %v645
      %v647 = vrot.slane %v639, 1
      %v648 = vsel %vm489, %v645, %v647
      %v649 = vrot.slane %v640, 1
      %v650 = vsel %vm489, %v647, %v649
      %v651 = vrot.slane %v641, 1
      %v652 = vsel %vm489, %v649, %v651
      %v654 = vsel %vm305, %v644, 0
      %v657 = vsel %vm305, %v646, 0
      %v660 = vsel %vm305, %v648, 0
      %v663 = vsel %vm305, %v650, 0
      %v666 = vsel %vm305, %v652, 0
      %v669 = vsel %vm321, %v613, 0
      %671 = vmatprep.subr.bf16.mxu0 0
      %672 = vmatpush1.bf16.msra.mxu0 0
      %673 = vmatprep.subr.bf16.mxu0 0
      %674 = vmatpush1.bf16.msra.mxu0 0
      %675 = vmatprep.subr.bf16.mxu0 0
      %676 = vmatpush1.bf16.msra.mxu0 0
      %677 = vmatprep.subr.bf16.mxu0 0
      %678 = vmatpush1.bf16.msra.mxu0 0
      %679 = vmatprep.subr.bf16.mxu0 0
      %680 = vmatpush1.bf16.msra.mxu0 0
      %681 = vmatprep.subr.bf16.mxu0 0
      %682 = vmatpush1.bf16.msra.mxu0 0
      %683 = vmatprep.subr.bf16.mxu0 0
      %684 = vmatpush1.bf16.msra.mxu0 0
      %685 = vmatprep.subr.bf16.mxu0 0
      %686 = vmatpush1.bf16.msra.mxu0 %v669
      %687 = vmatprep.subr.bf16.mxu0 0
      %688 = vmatpush2.bf16.msra.mxu0 0
      %689 = vmatprep.subr.bf16.mxu0 0
      %690 = vmatpush2.bf16.msra.mxu0 0
      %691 = vmatprep.subr.bf16.mxu0 0
      %692 = vmatpush2.bf16.msra.mxu0 0
      %693 = vmatprep.subr.bf16.mxu0 0
      %694 = vmatpush2.bf16.msra.mxu0 0
      %695 = vmatprep.subr.bf16.mxu0 0
      %696 = vmatpush2.bf16.msra.mxu0 0
      %697 = vmatprep.subr.bf16.mxu0 0
      %698 = vmatpush2.bf16.msra.mxu0 0
      %699 = vmatprep.subr.bf16.mxu0 0
      %700 = vmatpush2.bf16.msra.mxu0 0
      %701 = vmatprep.subr.bf16.mxu0 0
      %702 = vmatpush2.bf16.msra.mxu0 0
      %703 = vmatprep.mubr.bf16.mxu0 0
      %704 = vmatmul.mubr.bf16.gmra.mxu0 %v654
      %v705 = vpop.f32.mrf.mxu0
      %v706 = vadd.f32 0.0, %v705
      %v707 = vpop.f32.mrf.mxu0
      %v708 = vpop.f32.mrf.mxu0
      %v709 = vadd.f32 0.0, %v708
      %v710 = vpop.f32.mrf.mxu0
      %711 = vmatprep.mubr.bf16.mxu0 0
      %712 = vmatmul.mubr.bf16.gmra.mxu0 %v657
      %v713 = vpop.f32.mrf.mxu0
      %v714 = vadd.f32 0.0, %v713
      %v715 = vpop.f32.mrf.mxu0
      %v716 = vpop.f32.mrf.mxu0
      %v717 = vadd.f32 0.0, %v716
      %v718 = vpop.f32.mrf.mxu0
      %719 = vmatprep.mubr.bf16.mxu0 0
      %720 = vmatmul.mubr.bf16.gmra.mxu0 %v660
      %v721 = vpop.f32.mrf.mxu0
      %v722 = vadd.f32 0.0, %v721
      %v723 = vpop.f32.mrf.mxu0
      %v724 = vpop.f32.mrf.mxu0
      %v725 = vadd.f32 0.0, %v724
      %v726 = vpop.f32.mrf.mxu0
      %727 = vmatprep.mubr.bf16.mxu0 0
      %728 = vmatmul.mubr.bf16.gmra.mxu0 %v663
      %v729 = vpop.f32.mrf.mxu0
      %v730 = vadd.f32 0.0, %v729
      %v731 = vpop.f32.mrf.mxu0
      %v732 = vpop.f32.mrf.mxu0
      %v733 = vadd.f32 0.0, %v732
      %v734 = vpop.f32.mrf.mxu0
      %735 = vmatprep.mubr.bf16.mxu0 0
      %736 = vmatmul.mubr.bf16.gmra.mxu0 %v666
      %v737 = vpop.f32.mrf.mxu0
      %v738 = vadd.f32 0.0, %v737
      %v739 = vpop.f32.mrf.mxu0
      %v740 = vpop.f32.mrf.mxu0
      %v741 = vadd.f32 0.0, %v740
      %v742 = vpop.f32.mrf.mxu0
      %743 = vdwg.mxu0
      %v744 = vadd.f32 %v592, %v706
      %v745 = vadd.f32 %v593, %v709
      %v746 = vadd.f32 %v594, %v714
      %v747 = vadd.f32 %v595, %v717
      %v748 = vadd.f32 %v596, %v722
      %v749 = vadd.f32 %v597, %v725
      %v750 = vadd.f32 %v598, %v730
      %v751 = vadd.f32 %v599, %v733
      %v752 = vadd.f32 %v600, %v738
      %v753 = vadd.f32 %v601, %v741
      %v754 = vld [vmem:[%s207 + $0x2c] sm:$0x3]
      %v755 = vld [vmem:[%s1 + $0x10] sm:$0xf]
      %v757 = vunpack.c.l.b16 %v754
      %v758 = vpack.c.b16 %v757, %v757
      %vm759 = vsmask.f32 6400
      %v761 = vshrl.u32 %v636, 16
      %v763 = vrot.slane %v761, 1
      %v764 = vshll.u32 %v636, 16
      %v766 = vrot.slane %v764, 2
      %v767 = vor.u32 %v763, %v766
      %v769 = vshrl.u32 %v637, 16
      %v771 = vrot.slane %v769, 1
      %v772 = vshll.u32 %v637, 16
      %v774 = vrot.slane %v772, 2
      %v775 = vor.u32 %v771, %v774
      %v776 = vsel %vm759, %v767, %v775
      %v778 = vshrl.u32 %v638, 16
      %v780 = vrot.slane %v778, 1
      %v781 = vshll.u32 %v638, 16
      %v783 = vrot.slane %v781, 2
      %v784 = vor.u32 %v780, %v783
      %v785 = vsel %vm759, %v775, %v784
      %v787 = vshrl.u32 %v639, 16
      %v789 = vrot.slane %v787, 1
      %v790 = vshll.u32 %v639, 16
      %v792 = vrot.slane %v790, 2
      %v793 = vor.u32 %v789, %v792
      %v794 = vsel %vm759, %v784, %v793
      %v796 = vshrl.u32 %v640, 16
      %v798 = vrot.slane %v796, 1
      %v799 = vshll.u32 %v640, 16
      %v801 = vrot.slane %v799, 2
      %v802 = vor.u32 %v798, %v801
      %v803 = vsel %vm759, %v793, %v802
      %v805 = vshrl.u32 %v758, 16
      %v807 = vrot.slane %v805, 1
      %v808 = vshll.u32 %v758, 16
      %v810 = vrot.slane %v808, 2
      %v811 = vor.u32 %v807, %v810
      %v812 = vsel %vm759, %v802, %v811
      %v814 = vsel %vm305, %v776, 0
      %v817 = vsel %vm305, %v785, 0
      %v820 = vsel %vm305, %v794, 0
      %v823 = vsel %vm305, %v803, 0
      %v826 = vsel %vm305, %v812, 0
      %v829 = vsel %vm321, %v755, 0
      %831 = vmatprep.subr.bf16.mxu0 0
      %832 = vmatpush1.bf16.msra.mxu0 0
      %833 = vmatprep.subr.bf16.mxu0 0
      %834 = vmatpush1.bf16.msra.mxu0 0
      %835 = vmatprep.subr.bf16.mxu0 0
      %836 = vmatpush1.bf16.msra.mxu0 0
      %837 = vmatprep.subr.bf16.mxu0 0
      %838 = vmatpush1.bf16.msra.mxu0 0
      %839 = vmatprep.subr.bf16.mxu0 0
      %840 = vmatpush1.bf16.msra.mxu0 0
      %841 = vmatprep.subr.bf16.mxu0 0
      %842 = vmatpush1.bf16.msra.mxu0 0
      %843 = vmatprep.subr.bf16.mxu0 0
      %844 = vmatpush1.bf16.msra.mxu0 0
      %845 = vmatprep.subr.bf16.mxu0 0
      %846 = vmatpush1.bf16.msra.mxu0 %v829
      %847 = vmatprep.subr.bf16.mxu0 0
      %848 = vmatpush2.bf16.msra.mxu0 0
      %849 = vmatprep.subr.bf16.mxu0 0
      %850 = vmatpush2.bf16.msra.mxu0 0
      %851 = vmatprep.subr.bf16.mxu0 0
      %852 = vmatpush2.bf16.msra.mxu0 0
      %853 = vmatprep.subr.bf16.mxu0 0
      %854 = vmatpush2.bf16.msra.mxu0 0
      %855 = vmatprep.subr.bf16.mxu0 0
      %856 = vmatpush2.bf16.msra.mxu0 0
      %857 = vmatprep.subr.bf16.mxu0 0
      %858 = vmatpush2.bf16.msra.mxu0 0
      %859 = vmatprep.subr.bf16.mxu0 0
      %860 = vmatpush2.bf16.msra.mxu0 0
      %861 = vmatprep.subr.bf16.mxu0 0
      %862 = vmatpush2.bf16.msra.mxu0 0
      %863 = vmatprep.mubr.bf16.mxu0 0
      %864 = vmatmul.mubr.bf16.gmra.mxu0 %v814
      %v865 = vpop.f32.mrf.mxu0
      %v866 = vadd.f32 0.0, %v865
      %v867 = vpop.f32.mrf.mxu0
      %v868 = vpop.f32.mrf.mxu0
      %v869 = vadd.f32 0.0, %v868
      %v870 = vpop.f32.mrf.mxu0
      %871 = vmatprep.mubr.bf16.mxu0 0
      %872 = vmatmul.mubr.bf16.gmra.mxu0 %v817
      %v873 = vpop.f32.mrf.mxu0
      %v874 = vadd.f32 0.0, %v873
      %v875 = vpop.f32.mrf.mxu0
      %v876 = vpop.f32.mrf.mxu0
      %v877 = vadd.f32 0.0, %v876
      %v878 = vpop.f32.mrf.mxu0
      %879 = vmatprep.mubr.bf16.mxu0 0
      %880 = vmatmul.mubr.bf16.gmra.mxu0 %v820
      %v881 = vpop.f32.mrf.mxu0
      %v882 = vadd.f32 0.0, %v881
      %v883 = vpop.f32.mrf.mxu0
      %v884 = vpop.f32.mrf.mxu0
      %v885 = vadd.f32 0.0, %v884
      %v886 = vpop.f32.mrf.mxu0
      %887 = vmatprep.mubr.bf16.mxu0 0
      %888 = vmatmul.mubr.bf16.gmra.mxu0 %v823
      %v889 = vpop.f32.mrf.mxu0
      %v890 = vadd.f32 0.0, %v889
      %v891 = vpop.f32.mrf.mxu0
      %v892 = vpop.f32.mrf.mxu0
      %v893 = vadd.f32 0.0, %v892
      %v894 = vpop.f32.mrf.mxu0
      %895 = vmatprep.mubr.bf16.mxu0 0
      %896 = vmatmul.mubr.bf16.gmra.mxu0 %v826
      %v897 = vpop.f32.mrf.mxu0
      %v898 = vadd.f32 0.0, %v897
      %v899 = vpop.f32.mrf.mxu0
      %v900 = vpop.f32.mrf.mxu0
      %v901 = vadd.f32 0.0, %v900
      %v902 = vpop.f32.mrf.mxu0
      %903 = vdwg.mxu0
      %v904 = vadd.f32 %v744, %v866
      %v905 = vadd.f32 %v745, %v869
      %v906 = vadd.f32 %v746, %v874
      %v907 = vadd.f32 %v747, %v877
      %v908 = vadd.f32 %v748, %v882
      %v909 = vadd.f32 %v749, %v885
      %v910 = vadd.f32 %v750, %v890
      %v911 = vadd.f32 %v751, %v893
      %v912 = vadd.f32 %v752, %v898
      %v913 = vadd.f32 %v753, %v901
      %v914 = vld [vmem:[%s207 + $0x4] sm:$0xc]
      %v915 = vld [vmem:[%s1 + $0x14] sm:$0xf]
      %v917 = vunpack.c.l.b16 %v914
      %v918 = vpack.c.b16 %v626, %v917
      %vm919 = vcmask 1045504
      %v920 = vrot.slane %v918, 2
      %v921 = vrot.slane %v637, 2
      %v922 = vsel %vm919, %v920, %v921
      %v923 = vrot.slane %v638, 2
      %v924 = vsel %vm919, %v921, %v923
      %v925 = vrot.slane %v639, 2
      %v926 = vsel %vm919, %v923, %v925
      %v927 = vrot.slane %v640, 2
      %v928 = vsel %vm919, %v925, %v927
      %v929 = vrot.slane %v758, 2
      %v930 = vsel %vm919, %v927, %v929
      %v932 = vsel %vm305, %v922, 0
      %v935 = vsel %vm305, %v924, 0
      %v938 = vsel %vm305, %v926, 0
      %v941 = vsel %vm305, %v928, 0
      %v944 = vsel %vm305, %v930, 0
      %v947 = vsel %vm321, %v915, 0
      %949 = vmatprep.subr.bf16.mxu0 0
      %950 = vmatpush1.bf16.msra.mxu0 0
      %951 = vmatprep.subr.bf16.mxu0 0
      %952 = vmatpush1.bf16.msra.mxu0 0
      %953 = vmatprep.subr.bf16.mxu0 0
      %954 = vmatpush1.bf16.msra.mxu0 0
      %955 = vmatprep.subr.bf16.mxu0 0
      %956 = vmatpush1.bf16.msra.mxu0 0
      %957 = vmatprep.subr.bf16.mxu0 0
      %958 = vmatpush1.bf16.msra.mxu0 0
      %959 = vmatprep.subr.bf16.mxu0 0
      %960 = vmatpush1.bf16.msra.mxu0 0
      %961 = vmatprep.subr.bf16.mxu0 0
      %962 = vmatpush1.bf16.msra.mxu0 0
      %963 = vmatprep.subr.bf16.mxu0 0
      %964 = vmatpush1.bf16.msra.mxu0 %v947
      %965 = vmatprep.subr.bf16.mxu0 0
      %966 = vmatpush2.bf16.msra.mxu0 0
      %967 = vmatprep.subr.bf16.mxu0 0
      %968 = vmatpush2.bf16.msra.mxu0 0
      %969 = vmatprep.subr.bf16.mxu0 0
      %970 = vmatpush2.bf16.msra.mxu0 0
      %971 = vmatprep.subr.bf16.mxu0 0
      %972 = vmatpush2.bf16.msra.mxu0 0
      %973 = vmatprep.subr.bf16.mxu0 0
      %974 = vmatpush2.bf16.msra.mxu0 0
      %975 = vmatprep.subr.bf16.mxu0 0
      %976 = vmatpush2.bf16.msra.mxu0 0
      %977 = vmatprep.subr.bf16.mxu0 0
      %978 = vmatpush2.bf16.msra.mxu0 0
      %979 = vmatprep.subr.bf16.mxu0 0
      %980 = vmatpush2.bf16.msra.mxu0 0
      %981 = vmatprep.mubr.bf16.mxu0 0
      %982 = vmatmul.mubr.bf16.gmra.mxu0 %v932
      %v983 = vpop.f32.mrf.mxu0
      %v984 = vadd.f32 0.0, %v983
      %v985 = vpop.f32.mrf.mxu0
      %v986 = vpop.f32.mrf.mxu0
      %v987 = vadd.f32 0.0, %v986
      %v988 = vpop.f32.mrf.mxu0
      %989 = vmatprep.mubr.bf16.mxu0 0
      %990 = vmatmul.mubr.bf16.gmra.mxu0 %v935
      %v991 = vpop.f32.mrf.mxu0
      %v992 = vadd.f32 0.0, %v991
      %v993 = vpop.f32.mrf.mxu0
      %v994 = vpop.f32.mrf.mxu0
      %v995 = vadd.f32 0.0, %v994
      %v996 = vpop.f32.mrf.mxu0
      %997 = vmatprep.mubr.bf16.mxu0 0
      %998 = vmatmul.mubr.bf16.gmra.mxu0 %v938
      %v999 = vpop.f32.mrf.mxu0
      %v1000 = vadd.f32 0.0, %v999
      %v1001 = vpop.f32.mrf.mxu0
      %v1002 = vpop.f32.mrf.mxu0
      %v1003 = vadd.f32 0.0, %v1002
      %v1004 = vpop.f32.mrf.mxu0
      %1005 = vmatprep.mubr.bf16.mxu0 0
      %1006 = vmatmul.mubr.bf16.gmra.mxu0 %v941
      %v1007 = vpop.f32.mrf.mxu0
      %v1008 = vadd.f32 0.0, %v1007
      %v1009 = vpop.f32.mrf.mxu0
      %v1010 = vpop.f32.mrf.mxu0
      %v1011 = vadd.f32 0.0, %v1010
      %v1012 = vpop.f32.mrf.mxu0
      %1013 = vmatprep.mubr.bf16.mxu0 0
      %1014 = vmatmul.mubr.bf16.gmra.mxu0 %v944
      %v1015 = vpop.f32.mrf.mxu0
      %v1016 = vadd.f32 0.0, %v1015
      %v1017 = vpop.f32.mrf.mxu0
      %v1018 = vpop.f32.mrf.mxu0
      %v1019 = vadd.f32 0.0, %v1018
      %v1020 = vpop.f32.mrf.mxu0
      %1021 = vdwg.mxu0
      %v1022 = vadd.f32 %v904, %v984
      %v1023 = vadd.f32 %v905, %v987
      %v1024 = vadd.f32 %v906, %v992
      %v1025 = vadd.f32 %v907, %v995
      %v1026 = vadd.f32 %v908, %v1000
      %v1027 = vadd.f32 %v909, %v1003
      %v1028 = vadd.f32 %v910, %v1008
      %v1029 = vadd.f32 %v911, %v1011
      %v1030 = vadd.f32 %v912, %v1016
      %v1031 = vadd.f32 %v913, %v1019
      %v1032 = vld [vmem:[%s207 + $0x8] sm:$0xc]
      %v1033 = vld [vmem:[%s207 + $0xc] sm:$0xf]
      %v1034 = vld [vmem:[%s207 + $0x10] sm:$0xf]
      %v1035 = vld [vmem:[%s207 + $0x14] sm:$0xf]
      %v1036 = vld [vmem:[%s207 + $0x18] sm:$0xf]
      %v1037 = vld [vmem:[%s207 + $0x1c] sm:$0xf]
      %v1038 = vld [vmem:[%s207 + $0x20] sm:$0xf]
      %v1039 = vld [vmem:[%s207 + $0x24] sm:$0xf]
      %v1040 = vld [vmem:[%s207 + $0x28] sm:$0xf]
      %v1041 = vld [vmem:[%s207 + $0x2c] sm:$0xf]
      %v1042 = vld [vmem:[%s207 + $0x30] sm:$0x3]
      %v1043 = vld [vmem:[%s1 + $0x18] sm:$0xf]
      %v1055 = vunpack.c.l.b16 %v1032
      %v1056 = vunpack.c.l.b16 %v1033
      %v1057 = vunpack.c.l.b16 %v1034
      %v1058 = vunpack.c.l.b16 %v1035
      %v1059 = vunpack.c.l.b16 %v1036
      %v1060 = vunpack.c.l.b16 %v1037
      %v1061 = vunpack.c.l.b16 %v1038
      %v1062 = vunpack.c.l.b16 %v1039
      %v1063 = vunpack.c.l.b16 %v1040
      %v1064 = vunpack.c.l.b16 %v1041
      %v1065 = vunpack.c.l.b16 %v1042
      %v1066 = vpack.c.b16 %v1056, %v1055
      %v1067 = vpack.c.b16 %v1058, %v1057
      %v1068 = vpack.c.b16 %v1060, %v1059
      %v1069 = vpack.c.b16 %v1062, %v1061
      %v1070 = vpack.c.b16 %v1064, %v1063
      %v1071 = vpack.c.b16 %v1065, %v1065
      %v1072 = vrot.slane %v1066, 2
      %v1073 = vrot.slane %v1067, 2
      %v1074 = vsel %vm919, %v1072, %v1073
      %v1075 = vrot.slane %v1068, 2
      %v1076 = vsel %vm919, %v1073, %v1075
      %v1077 = vrot.slane %v1069, 2
      %v1078 = vsel %vm919, %v1075, %v1077
      %v1079 = vrot.slane %v1070, 2
      %v1080 = vsel %vm919, %v1077, %v1079
      %v1081 = vrot.slane %v1071, 2
      %v1082 = vsel %vm919, %v1079, %v1081
      %v1084 = vsel %vm305, %v1074, 0
      %v1087 = vsel %vm305, %v1076, 0
      %v1090 = vsel %vm305, %v1078, 0
      %v1093 = vsel %vm305, %v1080, 0
      %v1096 = vsel %vm305, %v1082, 0
      %v1099 = vsel %vm321, %v1043, 0
      %1101 = vmatprep.subr.bf16.mxu0 0
      %1102 = vmatpush1.bf16.msra.mxu0 0
      %1103 = vmatprep.subr.bf16.mxu0 0
      %1104 = vmatpush1.bf16.msra.mxu0 0
      %1105 = vmatprep.subr.bf16.mxu0 0
      %1106 = vmatpush1.bf16.msra.mxu0 0
      %1107 = vmatprep.subr.bf16.mxu0 0
      %1108 = vmatpush1.bf16.msra.mxu0 0
      %1109 = vmatprep.subr.bf16.mxu0 0
      %1110 = vmatpush1.bf16.msra.mxu0 0
      %1111 = vmatprep.subr.bf16.mxu0 0
      %1112 = vmatpush1.bf16.msra.mxu0 0
      %1113 = vmatprep.subr.bf16.mxu0 0
      %1114 = vmatpush1.bf16.msra.mxu0 0
      %1115 = vmatprep.subr.bf16.mxu0 0
      %1116 = vmatpush1.bf16.msra.mxu0 %v1099
      %1117 = vmatprep.subr.bf16.mxu0 0
      %1118 = vmatpush2.bf16.msra.mxu0 0
      %1119 = vmatprep.subr.bf16.mxu0 0
      %1120 = vmatpush2.bf16.msra.mxu0 0
      %1121 = vmatprep.subr.bf16.mxu0 0
      %1122 = vmatpush2.bf16.msra.mxu0 0
      %1123 = vmatprep.subr.bf16.mxu0 0
      %1124 = vmatpush2.bf16.msra.mxu0 0
      %1125 = vmatprep.subr.bf16.mxu0 0
      %1126 = vmatpush2.bf16.msra.mxu0 0
      %1127 = vmatprep.subr.bf16.mxu0 0
      %1128 = vmatpush2.bf16.msra.mxu0 0
      %1129 = vmatprep.subr.bf16.mxu0 0
      %1130 = vmatpush2.bf16.msra.mxu0 0
      %1131 = vmatprep.subr.bf16.mxu0 0
      %1132 = vmatpush2.bf16.msra.mxu0 0
      %1133 = vmatprep.mubr.bf16.mxu0 0
      %1134 = vmatmul.mubr.bf16.gmra.mxu0 %v1084
      %v1135 = vpop.f32.mrf.mxu0
      %v1136 = vadd.f32 0.0, %v1135
      %v1137 = vpop.f32.mrf.mxu0
      %v1138 = vpop.f32.mrf.mxu0
      %v1139 = vadd.f32 0.0, %v1138
      %v1140 = vpop.f32.mrf.mxu0
      %1141 = vmatprep.mubr.bf16.mxu0 0
      %1142 = vmatmul.mubr.bf16.gmra.mxu0 %v1087
      %v1143 = vpop.f32.mrf.mxu0
      %v1144 = vadd.f32 0.0, %v1143
      %v1145 = vpop.f32.mrf.mxu0
      %v1146 = vpop.f32.mrf.mxu0
      %v1147 = vadd.f32 0.0, %v1146
      %v1148 = vpop.f32.mrf.mxu0
      %1149 = vmatprep.mubr.bf16.mxu0 0
      %1150 = vmatmul.mubr.bf16.gmra.mxu0 %v1090
      %v1151 = vpop.f32.mrf.mxu0
      %v1152 = vadd.f32 0.0, %v1151
      %v1153 = vpop.f32.mrf.mxu0
      %v1154 = vpop.f32.mrf.mxu0
      %v1155 = vadd.f32 0.0, %v1154
      %v1156 = vpop.f32.mrf.mxu0
      %1157 = vmatprep.mubr.bf16.mxu0 0
      %1158 = vmatmul.mubr.bf16.gmra.mxu0 %v1093
      %v1159 = vpop.f32.mrf.mxu0
      %v1160 = vadd.f32 0.0, %v1159
      %v1161 = vpop.f32.mrf.mxu0
      %v1162 = vpop.f32.mrf.mxu0
      %v1163 = vadd.f32 0.0, %v1162
      %v1164 = vpop.f32.mrf.mxu0
      %1165 = vmatprep.mubr.bf16.mxu0 0
      %1166 = vmatmul.mubr.bf16.gmra.mxu0 %v1096
      %v1167 = vpop.f32.mrf.mxu0
      %v1168 = vadd.f32 0.0, %v1167
      %v1169 = vpop.f32.mrf.mxu0
      %v1170 = vpop.f32.mrf.mxu0
      %v1171 = vadd.f32 0.0, %v1170
      %v1172 = vpop.f32.mrf.mxu0
      %1173 = vdwg.mxu0
      %v1174 = vadd.f32 %v1022, %v1136
      %v1175 = vadd.f32 %v1023, %v1139
      %v1176 = vadd.f32 %v1024, %v1144
      %v1177 = vadd.f32 %v1025, %v1147
      %v1178 = vadd.f32 %v1026, %v1152
      %v1179 = vadd.f32 %v1027, %v1155
      %v1180 = vadd.f32 %v1028, %v1160
      %v1181 = vadd.f32 %v1029, %v1163
      %v1182 = vadd.f32 %v1030, %v1168
      %v1183 = vadd.f32 %v1031, %v1171
      %v1184 = vld [vmem:[%s207 + $0x30] sm:$0x7]
      %v1185 = vld [vmem:[%s1 + $0x1c] sm:$0xf]
      %v1187 = vunpack.c.l.b16 %v1184
      %v1188 = vpack.c.b16 %v1187, %v1187
      %vm1189 = vsmask.f32 5376
      %v1191 = vshrl.u32 %v1066, 16
      %v1193 = vrot.slane %v1191, 2
      %v1194 = vshll.u32 %v1066, 16
      %v1196 = vrot.slane %v1194, 3
      %v1197 = vor.u32 %v1193, %v1196
      %v1199 = vshrl.u32 %v1067, 16
      %v1201 = vrot.slane %v1199, 2
      %v1202 = vshll.u32 %v1067, 16
      %v1204 = vrot.slane %v1202, 3
      %v1205 = vor.u32 %v1201, %v1204
      %v1206 = vsel %vm1189, %v1197, %v1205
      %v1208 = vshrl.u32 %v1068, 16
      %v1210 = vrot.slane %v1208, 2
      %v1211 = vshll.u32 %v1068, 16
      %v1213 = vrot.slane %v1211, 3
      %v1214 = vor.u32 %v1210, %v1213
      %v1215 = vsel %vm1189, %v1205, %v1214
      %v1217 = vshrl.u32 %v1069, 16
      %v1219 = vrot.slane %v1217, 2
      %v1220 = vshll.u32 %v1069, 16
      %v1222 = vrot.slane %v1220, 3
      %v1223 = vor.u32 %v1219, %v1222
      %v1224 = vsel %vm1189, %v1214, %v1223
      %v1226 = vshrl.u32 %v1070, 16
      %v1228 = vrot.slane %v1226, 2
      %v1229 = vshll.u32 %v1070, 16
      %v1231 = vrot.slane %v1229, 3
      %v1232 = vor.u32 %v1228, %v1231
      %v1233 = vsel %vm1189, %v1223, %v1232
      %v1235 = vshrl.u32 %v1188, 16
      %v1237 = vrot.slane %v1235, 2
      %v1238 = vshll.u32 %v1188, 16
      %v1240 = vrot.slane %v1238, 3
      %v1241 = vor.u32 %v1237, %v1240
      %v1242 = vsel %vm1189, %v1232, %v1241
      %v1244 = vsel %vm305, %v1206, 0
      %v1247 = vsel %vm305, %v1215, 0
      %v1250 = vsel %vm305, %v1224, 0
      %v1253 = vsel %vm305, %v1233, 0
      %v1256 = vsel %vm305, %v1242, 0
      %v1259 = vsel %vm321, %v1185, 0
      %1261 = vmatprep.subr.bf16.mxu0 0
      %1262 = vmatpush1.bf16.msra.mxu0 0
      %1263 = vmatprep.subr.bf16.mxu0 0
      %1264 = vmatpush1.bf16.msra.mxu0 0
      %1265 = vmatprep.subr.bf16.mxu0 0
      %1266 = vmatpush1.bf16.msra.mxu0 0
      %1267 = vmatprep.subr.bf16.mxu0 0
      %1268 = vmatpush1.bf16.msra.mxu0 0
      %1269 = vmatprep.subr.bf16.mxu0 0
      %1270 = vmatpush1.bf16.msra.mxu0 0
      %1271 = vmatprep.subr.bf16.mxu0 0
      %1272 = vmatpush1.bf16.msra.mxu0 0
      %1273 = vmatprep.subr.bf16.mxu0 0
      %1274 = vmatpush1.bf16.msra.mxu0 0
      %1275 = vmatprep.subr.bf16.mxu0 0
      %1276 = vmatpush1.bf16.msra.mxu0 %v1259
      %1277 = vmatprep.subr.bf16.mxu0 0
      %1278 = vmatpush2.bf16.msra.mxu0 0
      %1279 = vmatprep.subr.bf16.mxu0 0
      %1280 = vmatpush2.bf16.msra.mxu0 0
      %1281 = vmatprep.subr.bf16.mxu0 0
      %1282 = vmatpush2.bf16.msra.mxu0 0
      %1283 = vmatprep.subr.bf16.mxu0 0
      %1284 = vmatpush2.bf16.msra.mxu0 0
      %1285 = vmatprep.subr.bf16.mxu0 0
      %1286 = vmatpush2.bf16.msra.mxu0 0
      %1287 = vmatprep.subr.bf16.mxu0 0
      %1288 = vmatpush2.bf16.msra.mxu0 0
      %1289 = vmatprep.subr.bf16.mxu0 0
      %1290 = vmatpush2.bf16.msra.mxu0 0
      %1291 = vmatprep.subr.bf16.mxu0 0
      %1292 = vmatpush2.bf16.msra.mxu0 0
      %1293 = vmatprep.mubr.bf16.mxu0 0
      %1294 = vmatmul.mubr.bf16.gmra.mxu0 %v1244
      %v1295 = vpop.f32.mrf.mxu0
      %v1296 = vadd.f32 0.0, %v1295
      %v1297 = vpop.f32.mrf.mxu0
      %v1298 = vpop.f32.mrf.mxu0
      %v1299 = vadd.f32 0.0, %v1298
      %v1300 = vpop.f32.mrf.mxu0
      %1301 = vmatprep.mubr.bf16.mxu0 0
      %1302 = vmatmul.mubr.bf16.gmra.mxu0 %v1247
      %v1303 = vpop.f32.mrf.mxu0
      %v1304 = vadd.f32 0.0, %v1303
      %v1305 = vpop.f32.mrf.mxu0
      %v1306 = vpop.f32.mrf.mxu0
      %v1307 = vadd.f32 0.0, %v1306
      %v1308 = vpop.f32.mrf.mxu0
      %1309 = vmatprep.mubr.bf16.mxu0 0
      %1310 = vmatmul.mubr.bf16.gmra.mxu0 %v1250
      %v1311 = vpop.f32.mrf.mxu0
      %v1312 = vadd.f32 0.0, %v1311
      %v1313 = vpop.f32.mrf.mxu0
      %v1314 = vpop.f32.mrf.mxu0
      %v1315 = vadd.f32 0.0, %v1314
      %v1316 = vpop.f32.mrf.mxu0
      %1317 = vmatprep.mubr.bf16.mxu0 0
      %1318 = vmatmul.mubr.bf16.gmra.mxu0 %v1253
      %v1319 = vpop.f32.mrf.mxu0
      %v1320 = vadd.f32 0.0, %v1319
      %v1321 = vpop.f32.mrf.mxu0
      %v1322 = vpop.f32.mrf.mxu0
      %v1323 = vadd.f32 0.0, %v1322
      %v1324 = vpop.f32.mrf.mxu0
      %1325 = vmatprep.mubr.bf16.mxu0 0
      %1326 = vmatmul.mubr.bf16.gmra.mxu0 %v1256
      %v1327 = vpop.f32.mrf.mxu0
      %v1328 = vadd.f32 0.0, %v1327
      %v1329 = vpop.f32.mrf.mxu0
      %v1330 = vpop.f32.mrf.mxu0
      %v1331 = vadd.f32 0.0, %v1330
      %v1332 = vpop.f32.mrf.mxu0
      %1333 = vdwg.mxu0
      %v1334 = vadd.f32 %v1174, %v1296
      %v1335 = vadd.f32 %v1175, %v1299
      %v1336 = vadd.f32 %v1176, %v1304
      %v1337 = vadd.f32 %v1177, %v1307
      %v1338 = vadd.f32 %v1178, %v1312
      %v1339 = vadd.f32 %v1179, %v1315
      %v1340 = vadd.f32 %v1180, %v1320
      %v1341 = vadd.f32 %v1181, %v1323
      %v1342 = vadd.f32 %v1182, %v1328
      %v1343 = vadd.f32 %v1183, %v1331
      %v1344 = vld [vmem:[%s207 + $0x8] sm:$0x8]
      %v1345 = vld [vmem:[%s1 + $0x20] sm:$0xf]
      %v1347 = vunpack.c.l.b16 %v1344
      %v1348 = vpack.c.b16 %v1056, %v1347
      %vm1349 = vcmask 1044480
      %v1350 = vrot.slane %v1348, 3
      %v1351 = vrot.slane %v1067, 3
      %v1352 = vsel %vm1349, %v1350, %v1351
      %v1353 = vrot.slane %v1068, 3
      %v1354 = vsel %vm1349, %v1351, %v1353
      %v1355 = vrot.slane %v1069, 3
      %v1356 = vsel %vm1349, %v1353, %v1355
      %v1357 = vrot.slane %v1070, 3
      %v1358 = vsel %vm1349, %v1355, %v1357
      %v1359 = vrot.slane %v1188, 3
      %v1360 = vsel %vm1349, %v1357, %v1359
      %v1362 = vsel %vm305, %v1352, 0
      %v1365 = vsel %vm305, %v1354, 0
      %v1368 = vsel %vm305, %v1356, 0
      %v1371 = vsel %vm305, %v1358, 0
      %v1374 = vsel %vm305, %v1360, 0
      %v1377 = vsel %vm321, %v1345, 0
      %1379 = vmatprep.subr.bf16.mxu0 0
      %1380 = vmatpush1.bf16.msra.mxu0 0
      %1381 = vmatprep.subr.bf16.mxu0 0
      %1382 = vmatpush1.bf16.msra.mxu0 0
      %1383 = vmatprep.subr.bf16.mxu0 0
      %1384 = vmatpush1.bf16.msra.mxu0 0
      %1385 = vmatprep.subr.bf16.mxu0 0
      %1386 = vmatpush1.bf16.msra.mxu0 0
      %1387 = vmatprep.subr.bf16.mxu0 0
      %1388 = vmatpush1.bf16.msra.mxu0 0
      %1389 = vmatprep.subr.bf16.mxu0 0
      %1390 = vmatpush1.bf16.msra.mxu0 0
      %1391 = vmatprep.subr.bf16.mxu0 0
      %1392 = vmatpush1.bf16.msra.mxu0 0
      %1393 = vmatprep.subr.bf16.mxu0 0
      %1394 = vmatpush1.bf16.msra.mxu0 %v1377
      %1395 = vmatprep.subr.bf16.mxu0 0
      %1396 = vmatpush2.bf16.msra.mxu0 0
      %1397 = vmatprep.subr.bf16.mxu0 0
      %1398 = vmatpush2.bf16.msra.mxu0 0
      %1399 = vmatprep.subr.bf16.mxu0 0
      %1400 = vmatpush2.bf16.msra.mxu0 0
      %1401 = vmatprep.subr.bf16.mxu0 0
      %1402 = vmatpush2.bf16.msra.mxu0 0
      %1403 = vmatprep.subr.bf16.mxu0 0
      %1404 = vmatpush2.bf16.msra.mxu0 0
      %1405 = vmatprep.subr.bf16.mxu0 0
      %1406 = vmatpush2.bf16.msra.mxu0 0
      %1407 = vmatprep.subr.bf16.mxu0 0
      %1408 = vmatpush2.bf16.msra.mxu0 0
      %1409 = vmatprep.subr.bf16.mxu0 0
      %1410 = vmatpush2.bf16.msra.mxu0 0
      %1411 = vmatprep.mubr.bf16.mxu0 0
      %1412 = vmatmul.mubr.bf16.gmra.mxu0 %v1362
      %v1413 = vpop.f32.mrf.mxu0
      %v1414 = vadd.f32 0.0, %v1413
      %v1415 = vpop.f32.mrf.mxu0
      %v1416 = vpop.f32.mrf.mxu0
      %v1417 = vadd.f32 0.0, %v1416
      %v1418 = vpop.f32.mrf.mxu0
      %1419 = vmatprep.mubr.bf16.mxu0 0
      %1420 = vmatmul.mubr.bf16.gmra.mxu0 %v1365
      %v1421 = vpop.f32.mrf.mxu0
      %v1422 = vadd.f32 0.0, %v1421
      %v1423 = vpop.f32.mrf.mxu0
      %v1424 = vpop.f32.mrf.mxu0
      %v1425 = vadd.f32 0.0, %v1424
      %v1426 = vpop.f32.mrf.mxu0
      %1427 = vmatprep.mubr.bf16.mxu0 0
      %1428 = vmatmul.mubr.bf16.gmra.mxu0 %v1368
      %v1429 = vpop.f32.mrf.mxu0
      %v1430 = vadd.f32 0.0, %v1429
      %v1431 = vpop.f32.mrf.mxu0
      %v1432 = vpop.f32.mrf.mxu0
      %v1433 = vadd.f32 0.0, %v1432
      %v1434 = vpop.f32.mrf.mxu0
      %1435 = vmatprep.mubr.bf16.mxu0 0
      %1436 = vmatmul.mubr.bf16.gmra.mxu0 %v1371
      %v1437 = vpop.f32.mrf.mxu0
      %v1438 = vadd.f32 0.0, %v1437
      %v1439 = vpop.f32.mrf.mxu0
      %v1440 = vpop.f32.mrf.mxu0
      %v1441 = vadd.f32 0.0, %v1440
      %v1442 = vpop.f32.mrf.mxu0
      %1443 = vmatprep.mubr.bf16.mxu0 0
      %1444 = vmatmul.mubr.bf16.gmra.mxu0 %v1374
      %v1445 = vpop.f32.mrf.mxu0
      %v1446 = vadd.f32 0.0, %v1445
      %v1447 = vpop.f32.mrf.mxu0
      %v1448 = vpop.f32.mrf.mxu0
      %v1449 = vadd.f32 0.0, %v1448
      %v1450 = vpop.f32.mrf.mxu0
      %1451 = vdwg.mxu0
      %v1452 = vadd.f32 %v1334, %v1414
      %v1453 = vadd.f32 %v1335, %v1417
      %v1454 = vadd.f32 %v1336, %v1422
      %v1455 = vadd.f32 %v1337, %v1425
      %v1456 = vadd.f32 %v1338, %v1430
      %v1457 = vadd.f32 %v1339, %v1433
      %v1458 = vadd.f32 %v1340, %v1438
      %v1459 = vadd.f32 %v1341, %v1441
      %v1460 = vadd.f32 %v1342, %v1446
      %v1461 = vadd.f32 %v1343, %v1449
      %v1462 = vld [vmem:[%s2] sm:$0x1]
      %v1463 = vlaneseq
      %v1464 = vshrl.u32 %v1463, 7
      %v1465 = vsub.s32 0, %v1464
      %v1466 = vrot.slane %v1462, %v1465
      %v1467 = vadd.f32 %v1452, %v1466
      %v1468 = vadd.f32 %v1453, %v1466
      %v1469 = vadd.f32 %v1454, %v1466
      %v1470 = vadd.f32 %v1455, %v1466
      %v1471 = vadd.f32 %v1456, %v1466
      %v1472 = vadd.f32 %v1457, %v1466
      %v1473 = vadd.f32 %v1458, %v1466
      %v1474 = vadd.f32 %v1459, %v1466
      %v1475 = vadd.f32 %v1460, %v1466
      %v1476 = vadd.f32 %v1461, %v1466
      %v1477 = vld [vmem:[%s212] sm:$0xf]
      %v1478 = vld [vmem:[%s212 + $0x4] sm:$0xf]
      %v1479 = vld [vmem:[%s212 + $0x8] sm:$0xf]
      %v1480 = vld [vmem:[%s212 + $0xc] sm:$0xf]
      %v1481 = vld [vmem:[%s212 + $0x10] sm:$0xf]
      %v1482 = vld [vmem:[%s212 + $0x14] sm:$0xf]
      %v1483 = vld [vmem:[%s212 + $0x18] sm:$0xf]
      %v1484 = vld [vmem:[%s212 + $0x1c] sm:$0xf]
      %v1485 = vld [vmem:[%s212 + $0x20] sm:$0xf]
      %v1486 = vld [vmem:[%s212 + $0x24] sm:$0xf]
      %v1487 = vunpack.c.l.bf16 %v1477
      %v1488 = vunpack.c.l.bf16 %v1478
      %v1489 = vunpack.c.l.bf16 %v1479
      %v1490 = vunpack.c.l.bf16 %v1480
      %v1491 = vunpack.c.l.bf16 %v1481
      %v1492 = vunpack.c.l.bf16 %v1482
      %v1493 = vunpack.c.l.bf16 %v1483
      %v1494 = vunpack.c.l.bf16 %v1484
      %v1495 = vunpack.c.l.bf16 %v1485
      %v1496 = vunpack.c.l.bf16 %v1486
      %v1497 = vadd.f32 %v1467, %v1487
      %v1498 = vadd.f32 %v1468, %v1488
      %v1499 = vadd.f32 %v1469, %v1489
      %v1500 = vadd.f32 %v1470, %v1490
      %v1501 = vadd.f32 %v1471, %v1491
      %v1502 = vadd.f32 %v1472, %v1492
      %v1503 = vadd.f32 %v1473, %v1493
      %v1504 = vadd.f32 %v1474, %v1494
      %v1505 = vadd.f32 %v1475, %v1495
      %v1506 = vadd.f32 %v1476, %v1496
      %v1507 = vmax.f32 %v1497, 0.0
      %v1508 = vmax.f32 %v1498, 0.0
      %v1509 = vmax.f32 %v1499, 0.0
      %v1510 = vmax.f32 %v1500, 0.0
      %v1511 = vmax.f32 %v1501, 0.0
      %v1512 = vmax.f32 %v1502, 0.0
      %v1513 = vmax.f32 %v1503, 0.0
      %v1514 = vmax.f32 %v1504, 0.0
      %v1515 = vmax.f32 %v1505, 0.0
      %v1516 = vmax.f32 %v1506, 0.0
      %v1517 = vld [vmem:[%s2 + $0x1] sm:$0x1]
      %v1518 = vlaneseq
      %v1519 = vshrl.u32 %v1518, 7
      %v1520 = vsub.s32 0, %v1519
      %v1521 = vrot.slane %v1517, %v1520
      %v1522 = vmul.f32 %v1507, %v1521
      %v1523 = vmul.f32 %v1508, %v1521
      %v1524 = vmul.f32 %v1509, %v1521
      %v1525 = vmul.f32 %v1510, %v1521
      %v1526 = vmul.f32 %v1511, %v1521
      %v1527 = vmul.f32 %v1512, %v1521
      %v1528 = vmul.f32 %v1513, %v1521
      %v1529 = vmul.f32 %v1514, %v1521
      %v1530 = vmul.f32 %v1515, %v1521
      %v1531 = vmul.f32 %v1516, %v1521
      %v1532 = vld [vmem:[%s2 + $0x2] sm:$0x1]
      %v1533 = vlaneseq
      %v1534 = vshrl.u32 %v1533, 7
      %v1535 = vsub.s32 0, %v1534
      %v1536 = vrot.slane %v1532, %v1535
      %v1537 = vadd.f32 %v1522, %v1536
      %v1538 = vadd.f32 %v1523, %v1536
      %v1539 = vadd.f32 %v1524, %v1536
      %v1540 = vadd.f32 %v1525, %v1536
      %v1541 = vadd.f32 %v1526, %v1536
      %v1542 = vadd.f32 %v1527, %v1536
      %v1543 = vadd.f32 %v1528, %v1536
      %v1544 = vadd.f32 %v1529, %v1536
      %v1545 = vadd.f32 %v1530, %v1536
      %v1546 = vadd.f32 %v1531, %v1536
      %1547 = vst.msk [vmem:[%s217] sm:$0xff] %vm305, %v1537
      %1548 = vst.msk [vmem:[%s217 + $0x8] sm:$0xff] %vm305, %v1538
      %1549 = vst.msk [vmem:[%s217 + $0x10] sm:$0xff] %vm305, %v1539
      %1550 = vst.msk [vmem:[%s217 + $0x18] sm:$0xff] %vm305, %v1540
      %1551 = vst.msk [vmem:[%s217 + $0x20] sm:$0xff] %vm305, %v1541
      %1552 = vst.msk [vmem:[%s217 + $0x28] sm:$0xff] %vm305, %v1542
      %1553 = vst.msk [vmem:[%s217 + $0x30] sm:$0xff] %vm305, %v1543
      %1554 = vst.msk [vmem:[%s217 + $0x38] sm:$0xff] %vm305, %v1544
      %1555 = vst.msk [vmem:[%s217 + $0x40] sm:$0xff] %vm305, %v1545
      %1556 = vst.msk [vmem:[%s217 + $0x48] sm:$0xff] %vm305, %v1546
      %p1557 = scmp.lt.s32.totalorder %s15, 1
      %s1558 = scalar_select %p1557, %s15, 1
      %s1559 = smul.addr %s1558, 10
      %s1560 = smul.addr %s1559, 8
      %s1561 = scalar_lea.vmem %s4, %s1560
      // Predicated region
      $region37: #{a_call__.3} parent=35 // pred_check
        %p1562 = pneg %p127
      $region38: #{a_call__.3} parent=35 // pred_check_branch
        %1564 = sbr.rel (%p1562) target = $region40
      $region39: #{a_call__.3} parent=35 // pred_region
        _
      $region40: #{a_call__.3} parent=35 // pred_fallthru
        _
    $region36: #{a_call__.3} parent=5 // pred_fallthru
      _
    %p1565 = scmp.le.s32.totalorder 2, %s10
    // Predicated region
    $region41: #{a_call__.3} parent=5 // pred_check
      %p1566 = pneg %p1565
    $region42: #{a_call__.3} parent=5 // pred_check_branch
      %1568 = sbr.rel (%p1566) target = $region44
    $region43: #{a_call__.3} parent=5 // pred_region
      %s1569 = ssub.s32 %s10, 2
      // Predicated region
      $region45: #{a_call__.3} parent=43 // pred_check
        %p1570 = pneg %p133
      $region46: #{a_call__.3} parent=43 // pred_check_branch
        %1572 = sbr.rel (%p1570) target = $region48
      $region47: #{a_call__.3} parent=43 // pred_region
        %p1573 = scmp.lt.s32.totalorder %s16, 1
        %s1574 = scalar_select %p1573, %s16, 1
        %s1575 = smul.addr %s1574, 10
        %s1576 = smul.addr %s1575, 8
        %s1577 = scalar_lea.vmem %s4, %s1576
      $region48: #{a_call__.3} parent=43 // pred_fallthru
        _
    $region44: #{a_call__.3} parent=5 // pred_fallthru
      _
  $region6: #{a_call__.3} parent=0 // loop_footer
    %s14 = sadd.s32 1, %s10
  $region7: #{a_call__.3} parent=0 // loop_footer_branch
    %9 = sbr.rel target = $region3
  $region8: #{a_call__.3} parent=0 // loop_exit
    _

</llo_original>
